<compile_context>
chip_gen: v5e
topology: v5e:2x2
jax: 0.10.0
libtpu: 0.0.40
codegen_flags: <defaults>
</compile_context>

<pallas_src>
import functools

import jax
import jax.numpy as jnp
import numpy as np
from jax import lax
from jax.experimental import pallas as pl
from jax.experimental.pallas import tpu as pltpu


# ----------------------------------------------------------------------------
# LSTM cell on a (B, 4*width) gate tile; gate order [i | f | g | o], each
# `width` lanes wide (width = 2H for the merged layer-0 state, H for layer 1).
# ----------------------------------------------------------------------------
def _cell(gates, c_prev, width):
    i = jax.nn.sigmoid(gates[:, 0 * width:1 * width])
    f = jax.nn.sigmoid(gates[:, 1 * width:2 * width])
    g = jnp.tanh(gates[:, 2 * width:3 * width])
    o = jax.nn.sigmoid(gates[:, 3 * width:4 * width])
    c = f * c_prev + i * g
    h = o * jnp.tanh(c)
    return h, c


# ----------------------------------------------------------------------------
# Fused Pallas kernel: 2-layer bidirectional LSTM + FC on last timestep
# ----------------------------------------------------------------------------
def _brnn_kernel(x_ref,                       # (T*B, 2D)  [x_t | x_{T-1-t}], time-major
                 w0_ih, w0_hh, b0,            # (2D,8H), (2H,8H), (1,8H)  merged layer 0
                 w1f_ih_f, w1f_ih_b,          # (H,4H), (H,4H)  layer-1 fwd input weights
                 w1f_hh, b1f,                 # (H,4H), (1,4H)
                 w1b_ih_f, w1b_ih_b, b1b,     # (H,4H), (H,4H), (1,4H)  layer-1 bwd
                 wfc, bfc,                    # (2H,C), (1,C)
                 out_ref,                     # (B, C)
                 hf_ref, hb_ref,              # VMEM scratch (T*B, H) each, f32
                 *, seq_len, batch, hidden):
    T, B, H = seq_len, batch, hidden
    f32 = jnp.float32

    x = x_ref[...]                                               # (T*B, 2D) f32

    # ---- layer 0: fused fwd+bwd input projection (single matmul, N = 8H) ----
    gx0 = jnp.dot(x, w0_ih[...], preferred_element_type=f32) + b0[...]   # (T*B, 8H)

    whh0 = w0_hh[...]                                            # (2H, 8H)
    mdt = whh0.dtype                 # MXU operand dtype for the recurrent path

    # ---- layer 0: merged fwd/bwd recurrence on the lane-stacked state -------
    hs = jnp.zeros((B, 2 * H), f32)                              # [h_f | h_b]
    cs = jnp.zeros((B, 2 * H), f32)                              # [c_f | c_b]
    for s in range(T):               # fwd processes time s, bwd processes T-1-s
        gates = gx0[s * B:(s + 1) * B, :] + jnp.dot(
            hs.astype(mdt), whh0, preferred_element_type=f32)    # (B, 8H)
        hs, cs = _cell(gates, cs, 2 * H)
        # scatter into time-major layer-1 input buffers
        hf_ref[s * B:(s + 1) * B, :] = hs[:, :H]                 # h_f(s)
        hb_ref[(T - 1 - s) * B:(T - s) * B, :] = hs[:, H:]       # h_b(T-1-s)

    # ---- layer 1: hoisted input projection (off the serial chain mostly) ----
    hf_all = hf_ref[...].astype(mdt)                             # (T*B, H)
    hb_all = hb_ref[...].astype(mdt)                             # (T*B, H)
    gx1 = (jnp.dot(hf_all, w1f_ih_f[...], preferred_element_type=f32)
           + jnp.dot(hb_all, w1f_ih_b[...], preferred_element_type=f32)
           + b1f[...])                                           # (T*B, 4H)

    # ---- layer 1 forward recurrence -----------------------------------------
    whh1 = w1f_hh[...]
    h = jnp.zeros((B, H), f32)
    c = jnp.zeros((B, H), f32)
    for t in range(T):
        gates = gx1[t * B:(t + 1) * B, :] + jnp.dot(
            h.astype(mdt), whh1, preferred_element_type=f32)
        h, c = _cell(gates, c, H)
    h1f_last = h                                                 # layer-1 fwd @ t=T-1

    # ---- layer 1 backward: single step.  VALID ONLY because the FC consumes
    # out[:, -1, :] and h0/c0 == 0, so t=T-1 is the backward direction's first
    # step and the recurrent term vanishes. ----------------------------------
    last = slice((T - 1) * B, T * B)
    gates_b = (jnp.dot(hf_all[last, :], w1b_ih_f[...], preferred_element_type=f32)
               + jnp.dot(hb_all[last, :], w1b_ih_b[...], preferred_element_type=f32)
               + b1b[...])
    h1b_last, _ = _cell(gates_b, jnp.zeros((B, H), f32), H)

    # ---- FC epilogue: one matmul on the lane-concatenated last state --------
    h_last = jnp.concatenate([h1f_last, h1b_last], axis=1).astype(mdt)   # (B, 2H)
    out_ref[...] = jnp.dot(h_last, wfc[...], preferred_element_type=f32) + bfc[...]


# ----------------------------------------------------------------------------
# Wrapper: one-time weight prep (merged / block-diagonal layouts) + pallas_call
# ----------------------------------------------------------------------------
@functools.partial(jax.jit, static_argnames=("hidden", "num_layers", "use_bf16"))
def brnn_forward(x_btd, params, hidden, num_layers, use_bf16=True):
    """PyTorch BRNN.forward:  (B, T, input_size) -> (B, num_classes)."""
    assert num_layers == 2, "fused kernel is specialized to num_layers=2"
    B, T, D = x_btd.shape
    H = hidden
    p0, p1 = params["lstm"]
    f32 = jnp.float32
    mdt = jnp.bfloat16 if use_bf16 else f32     # MXU operand dtype (recurrent path)

    # Time-major input with its time-reversed copy stacked on the feature axis
    # so one row block feeds both directions of the merged layer-0 recurrence.
    x_tm = jnp.transpose(x_btd, (1, 0, 2)).astype(f32)           # (T, B, D)
    x_merged = jnp.concatenate(
        [x_tm, jnp.flip(x_tm, axis=0)], axis=-1).reshape(T * B, 2 * D)

    def prep(p, d):
        wih = jnp.transpose(p[f"w_ih_{d}"])                      # (in, 4H)
        whh = jnp.transpose(p[f"w_hh_{d}"])                      # (H, 4H)
        b = p[f"b_ih_{d}"] + p[f"b_hh_{d}"]                      # (4H,)
        return wih, whh, b

    w0f_ih, w0f_hh, b0f = prep(p0, "f")
    w0b_ih, w0b_hh, b0b = prep(p0, "b")
    w1f_ih, w1f_hh, b1f = prep(p1, "f")
    w1b_ih, _, b1b = prep(p1, "b")              # layer-1 bwd W_hh unused (one step)

    def merge_cols(wf, wb):
        """(Kf,4H),(Kb,4H) -> (Kf+Kb, 8H) block weight, gate-major columns:
        cols[g*2H : g*2H+H] = fwd gate g (rows :Kf), next H = bwd gate g (rows Kf:)."""
        Kf, Kb = wf.shape[0], wb.shape[0]
        zf = jnp.zeros((Kf, H), f32)
        zb = jnp.zeros((Kb, H), f32)
        cols = []
        for g in range(4):
            top = jnp.concatenate([wf[:, g * H:(g + 1) * H], zf], axis=1)
            bot = jnp.concatenate([zb, wb[:, g * H:(g + 1) * H]], axis=1)
            cols.append(jnp.concatenate([top, bot], axis=0))
        return jnp.concatenate(cols, axis=1)

    def merge_bias(bf, bb):
        parts = []
        for g in range(4):
            parts += [bf[g * H:(g + 1) * H], bb[g * H:(g + 1) * H]]
        return jnp.concatenate(parts).reshape(1, 8 * H)

    w0_ih_blk = merge_cols(w0f_ih, w0b_ih)                       # (2D, 8H) f32
    w0_hh_blk = merge_cols(w0f_hh, w0b_hh).astype(mdt)           # (2H, 8H)
    b0 = merge_bias(b0f, b0b)                                    # (1, 8H)

    wfc = jnp.transpose(params["fc_w"]).astype(mdt)              # (2H, C)
    C = wfc.shape[1]
    bfc = params["fc_b"].reshape(1, C).astype(f32)

    operands = (
        x_merged, w0_ih_blk, w0_hh_blk, b0,
        w1f_ih[:H].astype(mdt), w1f_ih[H:].astype(mdt),
        w1f_hh.astype(mdt), b1f.reshape(1, 4 * H),
        w1b_ih[:H].astype(mdt), w1b_ih[H:].astype(mdt), b1b.reshape(1, 4 * H),
        wfc, bfc,
    )

    flops = 2 * (T * B * (2 * D) * (8 * H)        # layer-0 projection
                 + T * B * (2 * H) * (8 * H)      # layer-0 merged recurrence
                 + 2 * T * B * H * (4 * H)        # layer-1 projection
                 + T * B * H * (4 * H)            # layer-1 fwd recurrence
                 + 2 * B * H * (4 * H)            # layer-1 bwd single step
                 + B * (2 * H) * C)               # FC
    transcendentals = 5 * (T * B * 2 * H + T * B * H + B * H)
    bytes_accessed = int(sum(int(np.prod(o.shape)) * o.dtype.itemsize
                             for o in operands) + B * C * 4)

    kernel = functools.partial(_brnn_kernel, seq_len=T, batch=B, hidden=H)
    vmem = pl.BlockSpec(memory_space=pltpu.MemorySpace.VMEM)
    return pl.pallas_call(
        kernel,
        out_shape=jax.ShapeDtypeStruct((B, C), f32),
        in_specs=[vmem] * len(operands),
        out_specs=vmem,
        scratch_shapes=[pltpu.VMEM((T * B, H), f32),
                        pltpu.VMEM((T * B, H), f32)],
        cost_estimate=pl.CostEstimate(flops=flops,
                                      transcendentals=transcendentals,
                                      bytes_accessed=bytes_accessed),
    )(*operands)


# ----------------------------------------------------------------------------
# Pure-JAX reference (correctness check only)
# ----------------------------------------------------------------------------
def _ref_single_dir(x_tbd, w_ih, w_hh, b_ih, b_hh, H):
    B = x_tbd.shape[1]

    def step(carry, x_t):
        h, c = carry
        gates = x_t @ w_ih.T + h @ w_hh.T + b_ih + b_hh
        i = jax.nn.sigmoid(gates[:, :H])
        f = jax.nn.sigmoid(gates[:, H:2 * H])
        g = jnp.tanh(gates[:, 2 * H:3 * H])
        o = jax.nn.sigmoid(gates[:, 3 * H:])
        c = f * c + i * g
        h = o * jnp.tanh(c)
        return (h, c), h

    h0 = jnp.zeros((B, H), jnp.float32)
    (_, _), hs = lax.scan(step, (h0, h0), x_tbd)
    return hs


def brnn_forward_ref(x_btd, params, hidden, num_layers):
    layer_in = jnp.transpose(x_btd, (1, 0, 2))
    for layer in range(num_layers):
        p = params["lstm"][layer]
        h_fwd = _ref_single_dir(layer_in, p["w_ih_f"], p["w_hh_f"],
                                p["b_ih_f"], p["b_hh_f"], hidden)
        h_bwd = jnp.flip(_ref_single_dir(jnp.flip(layer_in, axis=0),
                                         p["w_ih_b"], p["w_hh_b"],
                                         p["b_ih_b"], p["b_hh_b"], hidden),
                         axis=0)
        layer_in = jnp.concatenate([h_fwd, h_bwd], axis=-1)
    last = layer_in[-1]
    return last @ params["fc_w"].T + params["fc_b"]


# ----------------------------------------------------------------------------
# Deterministic parameter init (shapes follow nn.LSTM / nn.Linear)
# ----------------------------------------------------------------------------
def init_params(key, input_size, hidden, num_layers, num_classes):
    k = 1.0 / np.sqrt(hidden)
    params = {"lstm": []}
    for layer in range(num_layers):
        in_dim = input_size if layer == 0 else 2 * hidden
        layer_p = {}
        for d in ("f", "b"):
            key, k1, k2, k3, k4 = jax.random.split(key, 5)
            layer_p[f"w_ih_{d}"] = jax.random.uniform(
                k1, (4 * hidden, in_dim), jnp.float32, -k, k)
            layer_p[f"w_hh_{d}"] = jax.random.uniform(
                k2, (4 * hidden, hidden), jnp.float32, -k, k)
            layer_p[f"b_ih_{d}"] = jax.random.uniform(
                k3, (4 * hidden,), jnp.float32, -k, k)
            layer_p[f"b_hh_{d}"] = jax.random.uniform(
                k4, (4 * hidden,), jnp.float32, -k, k)
        params["lstm"].append(layer_p)
    key, k1, k2 = jax.random.split(key, 3)
    kf = 1.0 / np.sqrt(2 * hidden)
    params["fc_w"] = jax.random.uniform(
        k1, (num_classes, 2 * hidden), jnp.float32, -kf, kf)
    params["fc_b"] = jax.random.uniform(
        k2, (num_classes,), jnp.float32, -kf, kf)
    return params


# ----------------------------------------------------------------------------
if __name__ == "__main__":
    # Small shapes consistent with the module's forward.
    batch, seq_len = 2, 8
    input_size, hidden_size, num_layers, num_classes = 28, 32, 2, 10

    key = jax.random.PRNGKey(0)
    key, xk = jax.random.split(key)
    x = jax.random.normal(xk, (batch, seq_len, input_size), jnp.float32)

    params = init_params(key, input_size, hidden_size, num_layers, num_classes)

    ref = jax.block_until_ready(
        brnn_forward_ref(x, params, hidden_size, num_layers))

    # Exact structural check: f32 MXU operands, tight tolerance.
    out_f32 = jax.block_until_ready(
        brnn_forward(x, params, hidden_size, num_layers, use_bf16=False))
    assert out_f32.shape == (batch, num_classes)
    np.testing.assert_allclose(np.asarray(out_f32), np.asarray(ref),
                               rtol=1e-5, atol=1e-5)

    # Performance default: bf16 MXU operands on the recurrent path (f32 state
    # and accumulation) -> relaxed tolerance, per the perf review.
    out = jax.block_until_ready(
        brnn_forward(x, params, hidden_size, num_layers, use_bf16=True))
    assert out.shape == (batch, num_classes)
    np.testing.assert_allclose(np.asarray(out), np.asarray(ref),
                               rtol=5e-2, atol=5e-2)

    print("KERNEL_OK")
</pallas_src>

<mosaic_0001>
module attributes {stable_mosaic.version = 11 : i64} {
  func.func @_brnn_kernel(%arg0: memref<16x56xf32, #tpu.memory_space<vmem>>, %arg1: memref<56x256xf32, #tpu.memory_space<vmem>>, %arg2: memref<64x256xf32, #tpu.memory_space<vmem>>, %arg3: memref<1x256xf32, #tpu.memory_space<vmem>>, %arg4: memref<32x128xf32, #tpu.memory_space<vmem>>, %arg5: memref<32x128xf32, #tpu.memory_space<vmem>>, %arg6: memref<32x128xf32, #tpu.memory_space<vmem>>, %arg7: memref<1x128xf32, #tpu.memory_space<vmem>>, %arg8: memref<32x128xf32, #tpu.memory_space<vmem>>, %arg9: memref<32x128xf32, #tpu.memory_space<vmem>>, %arg10: memref<1x128xf32, #tpu.memory_space<vmem>>, %arg11: memref<64x10xf32, #tpu.memory_space<vmem>>, %arg12: memref<1x10xf32, #tpu.memory_space<vmem>>, %arg13: memref<2x10xf32, #tpu.memory_space<vmem>>, %arg14: memref<16x32xf32, #tpu.memory_space<vmem>>, %arg15: memref<16x32xf32, #tpu.memory_space<vmem>>) attributes {dimension_semantics = [], scalar_prefetch = 0 : i64, scratch_operands = 2 : i64, tpu.core_type = #tpu.core_type<tc>} {
    %c0 = arith.constant 0 : index
    %c0_0 = arith.constant 0 : index
    %0 = vector.load %arg0[%c0, %c0_0] : memref<16x56xf32, #tpu.memory_space<vmem>>, vector<16x56xf32>
    %c0_1 = arith.constant 0 : index
    %c0_2 = arith.constant 0 : index
    %1 = vector.load %arg1[%c0_1, %c0_2] : memref<56x256xf32, #tpu.memory_space<vmem>>, vector<56x256xf32>
    %cst = arith.constant dense<0.000000e+00> : vector<16x256xf32>
    %2 = tpu.matmul %0, %1, %cst {dimension_numbers = #tpu.dot_dimension_numbers<[1], [0], [0], [1], [0, 0, 1, 1], [], []>} : vector<16x56xf32>, vector<56x256xf32>, vector<16x256xf32> -> vector<16x256xf32>
    %c0_3 = arith.constant 0 : index
    %c0_4 = arith.constant 0 : index
    %3 = vector.load %arg3[%c0_3, %c0_4] : memref<1x256xf32, #tpu.memory_space<vmem>>, vector<1x256xf32>
    %4 = vector.broadcast %3 : vector<1x256xf32> to vector<16x256xf32>
    %5 = arith.addf %2, %4 : vector<16x256xf32>
    %c0_5 = arith.constant 0 : index
    %c0_6 = arith.constant 0 : index
    %6 = vector.load %arg2[%c0_5, %c0_6] : memref<64x256xf32, #tpu.memory_space<vmem>>, vector<64x256xf32>
    %cst_7 = arith.constant 0.000000e+00 : f32
    %7 = vector.broadcast %cst_7 : f32 to vector<2x64xf32>
    %cst_8 = arith.constant 0.000000e+00 : f32
    %8 = vector.broadcast %cst_8 : f32 to vector<2x64xf32>
    %9 = vector.extract_strided_slice %5 {offsets = [0, 0], sizes = [2, 256], strides = [1, 1]} : vector<16x256xf32> to vector<2x256xf32>
    %cst_9 = arith.constant dense<0.000000e+00> : vector<2x256xf32>
    %10 = tpu.matmul %7, %6, %cst_9 {dimension_numbers = #tpu.dot_dimension_numbers<[1], [0], [0], [1], [0, 0, 1, 1], [], []>} : vector<2x64xf32>, vector<64x256xf32>, vector<2x256xf32> -> vector<2x256xf32>
    %11 = arith.addf %9, %10 : vector<2x256xf32>
    %12 = vector.extract_strided_slice %11 {offsets = [0, 0], sizes = [2, 64], strides = [1, 1]} : vector<2x256xf32> to vector<2x64xf32>
    %13 = arith.negf %12 : vector<2x64xf32>
    %14 = math.exp %13 : vector<2x64xf32>
    %cst_10 = arith.constant 1.000000e+00 : f32
    %15 = vector.broadcast %cst_10 : f32 to vector<2x64xf32>
    %16 = arith.addf %15, %14 : vector<2x64xf32>
    %17 = arith.divf %15, %16 : vector<2x64xf32>
    %18 = vector.extract_strided_slice %11 {offsets = [0, 64], sizes = [2, 64], strides = [1, 1]} : vector<2x256xf32> to vector<2x64xf32>
    %19 = arith.negf %18 : vector<2x64xf32>
    %20 = math.exp %19 : vector<2x64xf32>
    %cst_11 = arith.constant 1.000000e+00 : f32
    %21 = vector.broadcast %cst_11 : f32 to vector<2x64xf32>
    %22 = arith.addf %21, %20 : vector<2x64xf32>
    %23 = arith.divf %21, %22 : vector<2x64xf32>
    %24 = vector.extract_strided_slice %11 {offsets = [0, 128], sizes = [2, 64], strides = [1, 1]} : vector<2x256xf32> to vector<2x64xf32>
    %25 = math.tanh %24 : vector<2x64xf32>
    %26 = vector.extract_strided_slice %11 {offsets = [0, 192], sizes = [2, 64], strides = [1, 1]} : vector<2x256xf32> to vector<2x64xf32>
    %27 = arith.negf %26 : vector<2x64xf32>
    %28 = math.exp %27 : vector<2x64xf32>
    %cst_12 = arith.constant 1.000000e+00 : f32
    %29 = vector.broadcast %cst_12 : f32 to vector<2x64xf32>
    %30 = arith.addf %29, %28 : vector<2x64xf32>
    %31 = arith.divf %29, %30 : vector<2x64xf32>
    %32 = arith.mulf %23, %8 : vector<2x64xf32>
    %33 = arith.mulf %17, %25 : vector<2x64xf32>
    %34 = arith.addf %32, %33 : vector<2x64xf32>
    %35 = math.tanh %34 : vector<2x64xf32>
    %36 = arith.mulf %31, %35 : vector<2x64xf32>
    %37 = vector.extract_strided_slice %36 {offsets = [0, 0], sizes = [2, 32], strides = [1, 1]} : vector<2x64xf32> to vector<2x32xf32>
    %c0_13 = arith.constant 0 : index
    %c0_14 = arith.constant 0 : index
    %38 = vector.load %arg14[%c0_13, %c0_14] : memref<16x32xf32, #tpu.memory_space<vmem>>, vector<2x32xf32>
    tpu.vector_store %arg14[%c0_13, %c0_14], %37 {strides = array<i32>} : memref<16x32xf32, #tpu.memory_space<vmem>>, vector<2x32xf32>,
    %39 = vector.extract_strided_slice %36 {offsets = [0, 32], sizes = [2, 32], strides = [1, 1]} : vector<2x64xf32> to vector<2x32xf32>
    %c14 = arith.constant 14 : index
    %c0_15 = arith.constant 0 : index
    %40 = vector.load %arg15[%c14, %c0_15] : memref<16x32xf32, #tpu.memory_space<vmem>>, vector<2x32xf32>
    tpu.vector_store %arg15[%c14, %c0_15], %39 {strides = array<i32>} : memref<16x32xf32, #tpu.memory_space<vmem>>, vector<2x32xf32>,
    %41 = vector.extract_strided_slice %5 {offsets = [2, 0], sizes = [2, 256], strides = [1, 1]} : vector<16x256xf32> to vector<2x256xf32>
    %cst_16 = arith.constant dense<0.000000e+00> : vector<2x256xf32>
    %42 = tpu.matmul %36, %6, %cst_16 {dimension_numbers = #tpu.dot_dimension_numbers<[1], [0], [0], [1], [0, 0, 1, 1], [], []>} : vector<2x64xf32>, vector<64x256xf32>, vector<2x256xf32> -> vector<2x256xf32>
    %43 = arith.addf %41, %42 : vector<2x256xf32>
    %44 = vector.extract_strided_slice %43 {offsets = [0, 0], sizes = [2, 64], strides = [1, 1]} : vector<2x256xf32> to vector<2x64xf32>
    %45 = arith.negf %44 : vector<2x64xf32>
    %46 = math.exp %45 : vector<2x64xf32>
    %cst_17 = arith.constant 1.000000e+00 : f32
    %47 = vector.broadcast %cst_17 : f32 to vector<2x64xf32>
    %48 = arith.addf %47, %46 : vector<2x64xf32>
    %49 = arith.divf %47, %48 : vector<2x64xf32>
    %50 = vector.extract_strided_slice %43 {offsets = [0, 64], sizes = [2, 64], strides = [1, 1]} : vector<2x256xf32> to vector<2x64xf32>
    %51 = arith.negf %50 : vector<2x64xf32>
    %52 = math.exp %51 : vector<2x64xf32>
    %cst_18 = arith.constant 1.000000e+00 : f32
    %53 = vector.broadcast %cst_18 : f32 to vector<2x64xf32>
    %54 = arith.addf %53, %52 : vector<2x64xf32>
    %55 = arith.divf %53, %54 : vector<2x64xf32>
    %56 = vector.extract_strided_slice %43 {offsets = [0, 128], sizes = [2, 64], strides = [1, 1]} : vector<2x256xf32> to vector<2x64xf32>
    %57 = math.tanh %56 : vector<2x64xf32>
    %58 = vector.extract_strided_slice %43 {offsets = [0, 192], sizes = [2, 64], strides = [1, 1]} : vector<2x256xf32> to vector<2x64xf32>
    %59 = arith.negf %58 : vector<2x64xf32>
    %60 = math.exp %59 : vector<2x64xf32>
    %cst_19 = arith.constant 1.000000e+00 : f32
    %61 = vector.broadcast %cst_19 : f32 to vector<2x64xf32>
    %62 = arith.addf %61, %60 : vector<2x64xf32>
    %63 = arith.divf %61, %62 : vector<2x64xf32>
    %64 = arith.mulf %55, %34 : vector<2x64xf32>
    %65 = arith.mulf %49, %57 : vector<2x64xf32>
    %66 = arith.addf %64, %65 : vector<2x64xf32>
    %67 = math.tanh %66 : vector<2x64xf32>
    %68 = arith.mulf %63, %67 : vector<2x64xf32>
    %69 = vector.extract_strided_slice %68 {offsets = [0, 0], sizes = [2, 32], strides = [1, 1]} : vector<2x64xf32> to vector<2x32xf32>
    %c2 = arith.constant 2 : index
    %c0_20 = arith.constant 0 : index
    %70 = vector.load %arg14[%c2, %c0_20] : memref<16x32xf32, #tpu.memory_space<vmem>>, vector<2x32xf32>
    tpu.vector_store %arg14[%c2, %c0_20], %69 {strides = array<i32>} : memref<16x32xf32, #tpu.memory_space<vmem>>, vector<2x32xf32>,
    %71 = vector.extract_strided_slice %68 {offsets = [0, 32], sizes = [2, 32], strides = [1, 1]} : vector<2x64xf32> to vector<2x32xf32>
    %c12 = arith.constant 12 : index
    %c0_21 = arith.constant 0 : index
    %72 = vector.load %arg15[%c12, %c0_21] : memref<16x32xf32, #tpu.memory_space<vmem>>, vector<2x32xf32>
    tpu.vector_store %arg15[%c12, %c0_21], %71 {strides = array<i32>} : memref<16x32xf32, #tpu.memory_space<vmem>>, vector<2x32xf32>,
    %73 = vector.extract_strided_slice %5 {offsets = [4, 0], sizes = [2, 256], strides = [1, 1]} : vector<16x256xf32> to vector<2x256xf32>
    %cst_22 = arith.constant dense<0.000000e+00> : vector<2x256xf32>
    %74 = tpu.matmul %68, %6, %cst_22 {dimension_numbers = #tpu.dot_dimension_numbers<[1], [0], [0], [1], [0, 0, 1, 1], [], []>} : vector<2x64xf32>, vector<64x256xf32>, vector<2x256xf32> -> vector<2x256xf32>
    %75 = arith.addf %73, %74 : vector<2x256xf32>
    %76 = vector.extract_strided_slice %75 {offsets = [0, 0], sizes = [2, 64], strides = [1, 1]} : vector<2x256xf32> to vector<2x64xf32>
    %77 = arith.negf %76 : vector<2x64xf32>
    %78 = math.exp %77 : vector<2x64xf32>
    %cst_23 = arith.constant 1.000000e+00 : f32
    %79 = vector.broadcast %cst_23 : f32 to vector<2x64xf32>
    %80 = arith.addf %79, %78 : vector<2x64xf32>
    %81 = arith.divf %79, %80 : vector<2x64xf32>
    %82 = vector.extract_strided_slice %75 {offsets = [0, 64], sizes = [2, 64], strides = [1, 1]} : vector<2x256xf32> to vector<2x64xf32>
    %83 = arith.negf %82 : vector<2x64xf32>
    %84 = math.exp %83 : vector<2x64xf32>
    %cst_24 = arith.constant 1.000000e+00 : f32
    %85 = vector.broadcast %cst_24 : f32 to vector<2x64xf32>
    %86 = arith.addf %85, %84 : vector<2x64xf32>
    %87 = arith.divf %85, %86 : vector<2x64xf32>
    %88 = vector.extract_strided_slice %75 {offsets = [0, 128], sizes = [2, 64], strides = [1, 1]} : vector<2x256xf32> to vector<2x64xf32>
    %89 = math.tanh %88 : vector<2x64xf32>
    %90 = vector.extract_strided_slice %75 {offsets = [0, 192], sizes = [2, 64], strides = [1, 1]} : vector<2x256xf32> to vector<2x64xf32>
    %91 = arith.negf %90 : vector<2x64xf32>
    %92 = math.exp %91 : vector<2x64xf32>
    %cst_25 = arith.constant 1.000000e+00 : f32
    %93 = vector.broadcast %cst_25 : f32 to vector<2x64xf32>
    %94 = arith.addf %93, %92 : vector<2x64xf32>
    %95 = arith.divf %93, %94 : vector<2x64xf32>
    %96 = arith.mulf %87, %66 : vector<2x64xf32>
    %97 = arith.mulf %81, %89 : vector<2x64xf32>
    %98 = arith.addf %96, %97 : vector<2x64xf32>
    %99 = math.tanh %98 : vector<2x64xf32>
    %100 = arith.mulf %95, %99 : vector<2x64xf32>
    %101 = vector.extract_strided_slice %100 {offsets = [0, 0], sizes = [2, 32], strides = [1, 1]} : vector<2x64xf32> to vector<2x32xf32>
    %c4 = arith.constant 4 : index
    %c0_26 = arith.constant 0 : index
    %102 = vector.load %arg14[%c4, %c0_26] : memref<16x32xf32, #tpu.memory_space<vmem>>, vector<2x32xf32>
    tpu.vector_store %arg14[%c4, %c0_26], %101 {strides = array<i32>} : memref<16x32xf32, #tpu.memory_space<vmem>>, vector<2x32xf32>,
    %103 = vector.extract_strided_slice %100 {offsets = [0, 32], sizes = [2, 32], strides = [1, 1]} : vector<2x64xf32> to vector<2x32xf32>
    %c10 = arith.constant 10 : index
    %c0_27 = arith.constant 0 : index
    %104 = vector.load %arg15[%c10, %c0_27] : memref<16x32xf32, #tpu.memory_space<vmem>>, vector<2x32xf32>
    tpu.vector_store %arg15[%c10, %c0_27], %103 {strides = array<i32>} : memref<16x32xf32, #tpu.memory_space<vmem>>, vector<2x32xf32>,
    %105 = vector.extract_strided_slice %5 {offsets = [6, 0], sizes = [2, 256], strides = [1, 1]} : vector<16x256xf32> to vector<2x256xf32>
    %cst_28 = arith.constant dense<0.000000e+00> : vector<2x256xf32>
    %106 = tpu.matmul %100, %6, %cst_28 {dimension_numbers = #tpu.dot_dimension_numbers<[1], [0], [0], [1], [0, 0, 1, 1], [], []>} : vector<2x64xf32>, vector<64x256xf32>, vector<2x256xf32> -> vector<2x256xf32>
    %107 = arith.addf %105, %106 : vector<2x256xf32>
    %108 = vector.extract_strided_slice %107 {offsets = [0, 0], sizes = [2, 64], strides = [1, 1]} : vector<2x256xf32> to vector<2x64xf32>
    %109 = arith.negf %108 : vector<2x64xf32>
    %110 = math.exp %109 : vector<2x64xf32>
    %cst_29 = arith.constant 1.000000e+00 : f32
    %111 = vector.broadcast %cst_29 : f32 to vector<2x64xf32>
    %112 = arith.addf %111, %110 : vector<2x64xf32>
    %113 = arith.divf %111, %112 : vector<2x64xf32>
    %114 = vector.extract_strided_slice %107 {offsets = [0, 64], sizes = [2, 64], strides = [1, 1]} : vector<2x256xf32> to vector<2x64xf32>
    %115 = arith.negf %114 : vector<2x64xf32>
    %116 = math.exp %115 : vector<2x64xf32>
    %cst_30 = arith.constant 1.000000e+00 : f32
    %117 = vector.broadcast %cst_30 : f32 to vector<2x64xf32>
    %118 = arith.addf %117, %116 : vector<2x64xf32>
    %119 = arith.divf %117, %118 : vector<2x64xf32>
    %120 = vector.extract_strided_slice %107 {offsets = [0, 128], sizes = [2, 64], strides = [1, 1]} : vector<2x256xf32> to vector<2x64xf32>
    %121 = math.tanh %120 : vector<2x64xf32>
    %122 = vector.extract_strided_slice %107 {offsets = [0, 192], sizes = [2, 64], strides = [1, 1]} : vector<2x256xf32> to vector<2x64xf32>
    %123 = arith.negf %122 : vector<2x64xf32>
    %124 = math.exp %123 : vector<2x64xf32>
    %cst_31 = arith.constant 1.000000e+00 : f32
    %125 = vector.broadcast %cst_31 : f32 to vector<2x64xf32>
    %126 = arith.addf %125, %124 : vector<2x64xf32>
    %127 = arith.divf %125, %126 : vector<2x64xf32>
    %128 = arith.mulf %119, %98 : vector<2x64xf32>
    %129 = arith.mulf %113, %121 : vector<2x64xf32>
    %130 = arith.addf %128, %129 : vector<2x64xf32>
    %131 = math.tanh %130 : vector<2x64xf32>
    %132 = arith.mulf %127, %131 : vector<2x64xf32>
    %133 = vector.extract_strided_slice %132 {offsets = [0, 0], sizes = [2, 32], strides = [1, 1]} : vector<2x64xf32> to vector<2x32xf32>
    %c6 = arith.constant 6 : index
    %c0_32 = arith.constant 0 : index
    %134 = vector.load %arg14[%c6, %c0_32] : memref<16x32xf32, #tpu.memory_space<vmem>>, vector<2x32xf32>
    tpu.vector_store %arg14[%c6, %c0_32], %133 {strides = array<i32>} : memref<16x32xf32, #tpu.memory_space<vmem>>, vector<2x32xf32>,
    %135 = vector.extract_strided_slice %132 {offsets = [0, 32], sizes = [2, 32], strides = [1, 1]} : vector<2x64xf32> to vector<2x32xf32>
    %c8 = arith.constant 8 : index
    %c0_33 = arith.constant 0 : index
    %136 = vector.load %arg15[%c8, %c0_33] : memref<16x32xf32, #tpu.memory_space<vmem>>, vector<2x32xf32>
    tpu.vector_store %arg15[%c8, %c0_33], %135 {strides = array<i32>} : memref<16x32xf32, #tpu.memory_space<vmem>>, vector<2x32xf32>,
    %137 = vector.extract_strided_slice %5 {offsets = [8, 0], sizes = [2, 256], strides = [1, 1]} : vector<16x256xf32> to vector<2x256xf32>
    %cst_34 = arith.constant dense<0.000000e+00> : vector<2x256xf32>
    %138 = tpu.matmul %132, %6, %cst_34 {dimension_numbers = #tpu.dot_dimension_numbers<[1], [0], [0], [1], [0, 0, 1, 1], [], []>} : vector<2x64xf32>, vector<64x256xf32>, vector<2x256xf32> -> vector<2x256xf32>
    %139 = arith.addf %137, %138 : vector<2x256xf32>
    %140 = vector.extract_strided_slice %139 {offsets = [0, 0], sizes = [2, 64], strides = [1, 1]} : vector<2x256xf32> to vector<2x64xf32>
    %141 = arith.negf %140 : vector<2x64xf32>
    %142 = math.exp %141 : vector<2x64xf32>
    %cst_35 = arith.constant 1.000000e+00 : f32
    %143 = vector.broadcast %cst_35 : f32 to vector<2x64xf32>
    %144 = arith.addf %143, %142 : vector<2x64xf32>
    %145 = arith.divf %143, %144 : vector<2x64xf32>
    %146 = vector.extract_strided_slice %139 {offsets = [0, 64], sizes = [2, 64], strides = [1, 1]} : vector<2x256xf32> to vector<2x64xf32>
    %147 = arith.negf %146 : vector<2x64xf32>
    %148 = math.exp %147 : vector<2x64xf32>
    %cst_36 = arith.constant 1.000000e+00 : f32
    %149 = vector.broadcast %cst_36 : f32 to vector<2x64xf32>
    %150 = arith.addf %149, %148 : vector<2x64xf32>
    %151 = arith.divf %149, %150 : vector<2x64xf32>
    %152 = vector.extract_strided_slice %139 {offsets = [0, 128], sizes = [2, 64], strides = [1, 1]} : vector<2x256xf32> to vector<2x64xf32>
    %153 = math.tanh %152 : vector<2x64xf32>
    %154 = vector.extract_strided_slice %139 {offsets = [0, 192], sizes = [2, 64], strides = [1, 1]} : vector<2x256xf32> to vector<2x64xf32>
    %155 = arith.negf %154 : vector<2x64xf32>
    %156 = math.exp %155 : vector<2x64xf32>
    %cst_37 = arith.constant 1.000000e+00 : f32
    %157 = vector.broadcast %cst_37 : f32 to vector<2x64xf32>
    %158 = arith.addf %157, %156 : vector<2x64xf32>
    %159 = arith.divf %157, %158 : vector<2x64xf32>
    %160 = arith.mulf %151, %130 : vector<2x64xf32>
    %161 = arith.mulf %145, %153 : vector<2x64xf32>
    %162 = arith.addf %160, %161 : vector<2x64xf32>
    %163 = math.tanh %162 : vector<2x64xf32>
    %164 = arith.mulf %159, %163 : vector<2x64xf32>
    %165 = vector.extract_strided_slice %164 {offsets = [0, 0], sizes = [2, 32], strides = [1, 1]} : vector<2x64xf32> to vector<2x32xf32>
    %c8_38 = arith.constant 8 : index
    %c0_39 = arith.constant 0 : index
    %166 = vector.load %arg14[%c8_38, %c0_39] : memref<16x32xf32, #tpu.memory_space<vmem>>, vector<2x32xf32>
    tpu.vector_store %arg14[%c8_38, %c0_39], %165 {strides = array<i32>} : memref<16x32xf32, #tpu.memory_space<vmem>>, vector<2x32xf32>,
    %167 = vector.extract_strided_slice %164 {offsets = [0, 32], sizes = [2, 32], strides = [1, 1]} : vector<2x64xf32> to vector<2x32xf32>
    %c6_40 = arith.constant 6 : index
    %c0_41 = arith.constant 0 : index
    %168 = vector.load %arg15[%c6_40, %c0_41] : memref<16x32xf32, #tpu.memory_space<vmem>>, vector<2x32xf32>
    tpu.vector_store %arg15[%c6_40, %c0_41], %167 {strides = array<i32>} : memref<16x32xf32, #tpu.memory_space<vmem>>, vector<2x32xf32>,
    %169 = vector.extract_strided_slice %5 {offsets = [10, 0], sizes = [2, 256], strides = [1, 1]} : vector<16x256xf32> to vector<2x256xf32>
    %cst_42 = arith.constant dense<0.000000e+00> : vector<2x256xf32>
    %170 = tpu.matmul %164, %6, %cst_42 {dimension_numbers = #tpu.dot_dimension_numbers<[1], [0], [0], [1], [0, 0, 1, 1], [], []>} : vector<2x64xf32>, vector<64x256xf32>, vector<2x256xf32> -> vector<2x256xf32>
    %171 = arith.addf %169, %170 : vector<2x256xf32>
    %172 = vector.extract_strided_slice %171 {offsets = [0, 0], sizes = [2, 64], strides = [1, 1]} : vector<2x256xf32> to vector<2x64xf32>
    %173 = arith.negf %172 : vector<2x64xf32>
    %174 = math.exp %173 : vector<2x64xf32>
    %cst_43 = arith.constant 1.000000e+00 : f32
    %175 = vector.broadcast %cst_43 : f32 to vector<2x64xf32>
    %176 = arith.addf %175, %174 : vector<2x64xf32>
    %177 = arith.divf %175, %176 : vector<2x64xf32>
    %178 = vector.extract_strided_slice %171 {offsets = [0, 64], sizes = [2, 64], strides = [1, 1]} : vector<2x256xf32> to vector<2x64xf32>
    %179 = arith.negf %178 : vector<2x64xf32>
    %180 = math.exp %179 : vector<2x64xf32>
    %cst_44 = arith.constant 1.000000e+00 : f32
    %181 = vector.broadcast %cst_44 : f32 to vector<2x64xf32>
    %182 = arith.addf %181, %180 : vector<2x64xf32>
    %183 = arith.divf %181, %182 : vector<2x64xf32>
    %184 = vector.extract_strided_slice %171 {offsets = [0, 128], sizes = [2, 64], strides = [1, 1]} : vector<2x256xf32> to vector<2x64xf32>
    %185 = math.tanh %184 : vector<2x64xf32>
    %186 = vector.extract_strided_slice %171 {offsets = [0, 192], sizes = [2, 64], strides = [1, 1]} : vector<2x256xf32> to vector<2x64xf32>
    %187 = arith.negf %186 : vector<2x64xf32>
    %188 = math.exp %187 : vector<2x64xf32>
    %cst_45 = arith.constant 1.000000e+00 : f32
    %189 = vector.broadcast %cst_45 : f32 to vector<2x64xf32>
    %190 = arith.addf %189, %188 : vector<2x64xf32>
    %191 = arith.divf %189, %190 : vector<2x64xf32>
    %192 = arith.mulf %183, %162 : vector<2x64xf32>
    %193 = arith.mulf %177, %185 : vector<2x64xf32>
    %194 = arith.addf %192, %193 : vector<2x64xf32>
    %195 = math.tanh %194 : vector<2x64xf32>
    %196 = arith.mulf %191, %195 : vector<2x64xf32>
    %197 = vector.extract_strided_slice %196 {offsets = [0, 0], sizes = [2, 32], strides = [1, 1]} : vector<2x64xf32> to vector<2x32xf32>
    %c10_46 = arith.constant 10 : index
    %c0_47 = arith.constant 0 : index
    %198 = vector.load %arg14[%c10_46, %c0_47] : memref<16x32xf32, #tpu.memory_space<vmem>>, vector<2x32xf32>
    tpu.vector_store %arg14[%c10_46, %c0_47], %197 {strides = array<i32>} : memref<16x32xf32, #tpu.memory_space<vmem>>, vector<2x32xf32>,
    %199 = vector.extract_strided_slice %196 {offsets = [0, 32], sizes = [2, 32], strides = [1, 1]} : vector<2x64xf32> to vector<2x32xf32>
    %c4_48 = arith.constant 4 : index
    %c0_49 = arith.constant 0 : index
    %200 = vector.load %arg15[%c4_48, %c0_49] : memref<16x32xf32, #tpu.memory_space<vmem>>, vector<2x32xf32>
    tpu.vector_store %arg15[%c4_48, %c0_49], %199 {strides = array<i32>} : memref<16x32xf32, #tpu.memory_space<vmem>>, vector<2x32xf32>,
    %201 = vector.extract_strided_slice %5 {offsets = [12, 0], sizes = [2, 256], strides = [1, 1]} : vector<16x256xf32> to vector<2x256xf32>
    %cst_50 = arith.constant dense<0.000000e+00> : vector<2x256xf32>
    %202 = tpu.matmul %196, %6, %cst_50 {dimension_numbers = #tpu.dot_dimension_numbers<[1], [0], [0], [1], [0, 0, 1, 1], [], []>} : vector<2x64xf32>, vector<64x256xf32>, vector<2x256xf32> -> vector<2x256xf32>
    %203 = arith.addf %201, %202 : vector<2x256xf32>
    %204 = vector.extract_strided_slice %203 {offsets = [0, 0], sizes = [2, 64], strides = [1, 1]} : vector<2x256xf32> to vector<2x64xf32>
    %205 = arith.negf %204 : vector<2x64xf32>
    %206 = math.exp %205 : vector<2x64xf32>
    %cst_51 = arith.constant 1.000000e+00 : f32
    %207 = vector.broadcast %cst_51 : f32 to vector<2x64xf32>
    %208 = arith.addf %207, %206 : vector<2x64xf32>
    %209 = arith.divf %207, %208 : vector<2x64xf32>
    %210 = vector.extract_strided_slice %203 {offsets = [0, 64], sizes = [2, 64], strides = [1, 1]} : vector<2x256xf32> to vector<2x64xf32>
    %211 = arith.negf %210 : vector<2x64xf32>
    %212 = math.exp %211 : vector<2x64xf32>
    %cst_52 = arith.constant 1.000000e+00 : f32
    %213 = vector.broadcast %cst_52 : f32 to vector<2x64xf32>
    %214 = arith.addf %213, %212 : vector<2x64xf32>
    %215 = arith.divf %213, %214 : vector<2x64xf32>
    %216 = vector.extract_strided_slice %203 {offsets = [0, 128], sizes = [2, 64], strides = [1, 1]} : vector<2x256xf32> to vector<2x64xf32>
    %217 = math.tanh %216 : vector<2x64xf32>
    %218 = vector.extract_strided_slice %203 {offsets = [0, 192], sizes = [2, 64], strides = [1, 1]} : vector<2x256xf32> to vector<2x64xf32>
    %219 = arith.negf %218 : vector<2x64xf32>
    %220 = math.exp %219 : vector<2x64xf32>
    %cst_53 = arith.constant 1.000000e+00 : f32
    %221 = vector.broadcast %cst_53 : f32 to vector<2x64xf32>
    %222 = arith.addf %221, %220 : vector<2x64xf32>
    %223 = arith.divf %221, %222 : vector<2x64xf32>
    %224 = arith.mulf %215, %194 : vector<2x64xf32>
    %225 = arith.mulf %209, %217 : vector<2x64xf32>
    %226 = arith.addf %224, %225 : vector<2x64xf32>
    %227 = math.tanh %226 : vector<2x64xf32>
    %228 = arith.mulf %223, %227 : vector<2x64xf32>
    %229 = vector.extract_strided_slice %228 {offsets = [0, 0], sizes = [2, 32], strides = [1, 1]} : vector<2x64xf32> to vector<2x32xf32>
    %c12_54 = arith.constant 12 : index
    %c0_55 = arith.constant 0 : index
    %230 = vector.load %arg14[%c12_54, %c0_55] : memref<16x32xf32, #tpu.memory_space<vmem>>, vector<2x32xf32>
    tpu.vector_store %arg14[%c12_54, %c0_55], %229 {strides = array<i32>} : memref<16x32xf32, #tpu.memory_space<vmem>>, vector<2x32xf32>,
    %231 = vector.extract_strided_slice %228 {offsets = [0, 32], sizes = [2, 32], strides = [1, 1]} : vector<2x64xf32> to vector<2x32xf32>
    %c2_56 = arith.constant 2 : index
    %c0_57 = arith.constant 0 : index
    %232 = vector.load %arg15[%c2_56, %c0_57] : memref<16x32xf32, #tpu.memory_space<vmem>>, vector<2x32xf32>
    tpu.vector_store %arg15[%c2_56, %c0_57], %231 {strides = array<i32>} : memref<16x32xf32, #tpu.memory_space<vmem>>, vector<2x32xf32>,
    %233 = vector.extract_strided_slice %5 {offsets = [14, 0], sizes = [2, 256], strides = [1, 1]} : vector<16x256xf32> to vector<2x256xf32>
    %cst_58 = arith.constant dense<0.000000e+00> : vector<2x256xf32>
    %234 = tpu.matmul %228, %6, %cst_58 {dimension_numbers = #tpu.dot_dimension_numbers<[1], [0], [0], [1], [0, 0, 1, 1], [], []>} : vector<2x64xf32>, vector<64x256xf32>, vector<2x256xf32> -> vector<2x256xf32>
    %235 = arith.addf %233, %234 : vector<2x256xf32>
    %236 = vector.extract_strided_slice %235 {offsets = [0, 0], sizes = [2, 64], strides = [1, 1]} : vector<2x256xf32> to vector<2x64xf32>
    %237 = arith.negf %236 : vector<2x64xf32>
    %238 = math.exp %237 : vector<2x64xf32>
    %cst_59 = arith.constant 1.000000e+00 : f32
    %239 = vector.broadcast %cst_59 : f32 to vector<2x64xf32>
    %240 = arith.addf %239, %238 : vector<2x64xf32>
    %241 = arith.divf %239, %240 : vector<2x64xf32>
    %242 = vector.extract_strided_slice %235 {offsets = [0, 64], sizes = [2, 64], strides = [1, 1]} : vector<2x256xf32> to vector<2x64xf32>
    %243 = arith.negf %242 : vector<2x64xf32>
    %244 = math.exp %243 : vector<2x64xf32>
    %cst_60 = arith.constant 1.000000e+00 : f32
    %245 = vector.broadcast %cst_60 : f32 to vector<2x64xf32>
    %246 = arith.addf %245, %244 : vector<2x64xf32>
    %247 = arith.divf %245, %246 : vector<2x64xf32>
    %248 = vector.extract_strided_slice %235 {offsets = [0, 128], sizes = [2, 64], strides = [1, 1]} : vector<2x256xf32> to vector<2x64xf32>
    %249 = math.tanh %248 : vector<2x64xf32>
    %250 = vector.extract_strided_slice %235 {offsets = [0, 192], sizes = [2, 64], strides = [1, 1]} : vector<2x256xf32> to vector<2x64xf32>
    %251 = arith.negf %250 : vector<2x64xf32>
    %252 = math.exp %251 : vector<2x64xf32>
    %cst_61 = arith.constant 1.000000e+00 : f32
    %253 = vector.broadcast %cst_61 : f32 to vector<2x64xf32>
    %254 = arith.addf %253, %252 : vector<2x64xf32>
    %255 = arith.divf %253, %254 : vector<2x64xf32>
    %256 = arith.mulf %247, %226 : vector<2x64xf32>
    %257 = arith.mulf %241, %249 : vector<2x64xf32>
    %258 = arith.addf %256, %257 : vector<2x64xf32>
    %259 = math.tanh %258 : vector<2x64xf32>
    %260 = arith.mulf %255, %259 : vector<2x64xf32>
    %261 = vector.extract_strided_slice %260 {offsets = [0, 0], sizes = [2, 32], strides = [1, 1]} : vector<2x64xf32> to vector<2x32xf32>
    %c14_62 = arith.constant 14 : index
    %c0_63 = arith.constant 0 : index
    %262 = vector.load %arg14[%c14_62, %c0_63] : memref<16x32xf32, #tpu.memory_space<vmem>>, vector<2x32xf32>
    tpu.vector_store %arg14[%c14_62, %c0_63], %261 {strides = array<i32>} : memref<16x32xf32, #tpu.memory_space<vmem>>, vector<2x32xf32>,
    %263 = vector.extract_strided_slice %260 {offsets = [0, 32], sizes = [2, 32], strides = [1, 1]} : vector<2x64xf32> to vector<2x32xf32>
    %c0_64 = arith.constant 0 : index
    %c0_65 = arith.constant 0 : index
    %264 = vector.load %arg15[%c0_64, %c0_65] : memref<16x32xf32, #tpu.memory_space<vmem>>, vector<2x32xf32>
    tpu.vector_store %arg15[%c0_64, %c0_65], %263 {strides = array<i32>} : memref<16x32xf32, #tpu.memory_space<vmem>>, vector<2x32xf32>,
    %c0_66 = arith.constant 0 : index
    %c0_67 = arith.constant 0 : index
    %265 = vector.load %arg14[%c0_66, %c0_67] : memref<16x32xf32, #tpu.memory_space<vmem>>, vector<16x32xf32>
    %c0_68 = arith.constant 0 : index
    %c0_69 = arith.constant 0 : index
    %266 = vector.load %arg15[%c0_68, %c0_69] : memref<16x32xf32, #tpu.memory_space<vmem>>, vector<16x32xf32>
    %c0_70 = arith.constant 0 : index
    %c0_71 = arith.constant 0 : index
    %267 = vector.load %arg4[%c0_70, %c0_71] : memref<32x128xf32, #tpu.memory_space<vmem>>, vector<32x128xf32>
    %cst_72 = arith.constant dense<0.000000e+00> : vector<16x128xf32>
    %268 = tpu.matmul %265, %267, %cst_72 {dimension_numbers = #tpu.dot_dimension_numbers<[1], [0], [0], [1], [0, 0, 1, 1], [], []>} : vector<16x32xf32>, vector<32x128xf32>, vector<16x128xf32> -> vector<16x128xf32>
    %c0_73 = arith.constant 0 : index
    %c0_74 = arith.constant 0 : index
    %269 = vector.load %arg5[%c0_73, %c0_74] : memref<32x128xf32, #tpu.memory_space<vmem>>, vector<32x128xf32>
    %cst_75 = arith.constant dense<0.000000e+00> : vector<16x128xf32>
    %270 = tpu.matmul %266, %269, %cst_75 {dimension_numbers = #tpu.dot_dimension_numbers<[1], [0], [0], [1], [0, 0, 1, 1], [], []>} : vector<16x32xf32>, vector<32x128xf32>, vector<16x128xf32> -> vector<16x128xf32>
    %271 = arith.addf %268, %270 : vector<16x128xf32>
    %c0_76 = arith.constant 0 : index
    %c0_77 = arith.constant 0 : index
    %272 = vector.load %arg7[%c0_76, %c0_77] : memref<1x128xf32, #tpu.memory_space<vmem>>, vector<1x128xf32>
    %273 = vector.broadcast %272 : vector<1x128xf32> to vector<16x128xf32>
    %274 = arith.addf %271, %273 : vector<16x128xf32>
    %c0_78 = arith.constant 0 : index
    %c0_79 = arith.constant 0 : index
    %275 = vector.load %arg6[%c0_78, %c0_79] : memref<32x128xf32, #tpu.memory_space<vmem>>, vector<32x128xf32>
    %cst_80 = arith.constant 0.000000e+00 : f32
    %276 = vector.broadcast %cst_80 : f32 to vector<2x32xf32>
    %cst_81 = arith.constant 0.000000e+00 : f32
    %277 = vector.broadcast %cst_81 : f32 to vector<2x32xf32>
    %278 = vector.extract_strided_slice %274 {offsets = [0, 0], sizes = [2, 128], strides = [1, 1]} : vector<16x128xf32> to vector<2x128xf32>
    %cst_82 = arith.constant dense<0.000000e+00> : vector<2x128xf32>
    %279 = tpu.matmul %276, %275, %cst_82 {dimension_numbers = #tpu.dot_dimension_numbers<[1], [0], [0], [1], [0, 0, 1, 1], [], []>} : vector<2x32xf32>, vector<32x128xf32>, vector<2x128xf32> -> vector<2x128xf32>
    %280 = arith.addf %278, %279 : vector<2x128xf32>
    %281 = vector.extract_strided_slice %280 {offsets = [0, 0], sizes = [2, 32], strides = [1, 1]} : vector<2x128xf32> to vector<2x32xf32>
    %282 = arith.negf %281 : vector<2x32xf32>
    %283 = math.exp %282 : vector<2x32xf32>
    %cst_83 = arith.constant 1.000000e+00 : f32
    %284 = vector.broadcast %cst_83 : f32 to vector<2x32xf32>
    %285 = arith.addf %284, %283 : vector<2x32xf32>
    %286 = arith.divf %284, %285 : vector<2x32xf32>
    %287 = vector.extract_strided_slice %280 {offsets = [0, 32], sizes = [2, 32], strides = [1, 1]} : vector<2x128xf32> to vector<2x32xf32>
    %288 = arith.negf %287 : vector<2x32xf32>
    %289 = math.exp %288 : vector<2x32xf32>
    %cst_84 = arith.constant 1.000000e+00 : f32
    %290 = vector.broadcast %cst_84 : f32 to vector<2x32xf32>
    %291 = arith.addf %290, %289 : vector<2x32xf32>
    %292 = arith.divf %290, %291 : vector<2x32xf32>
    %293 = vector.extract_strided_slice %280 {offsets = [0, 64], sizes = [2, 32], strides = [1, 1]} : vector<2x128xf32> to vector<2x32xf32>
    %294 = math.tanh %293 : vector<2x32xf32>
    %295 = vector.extract_strided_slice %280 {offsets = [0, 96], sizes = [2, 32], strides = [1, 1]} : vector<2x128xf32> to vector<2x32xf32>
    %296 = arith.negf %295 : vector<2x32xf32>
    %297 = math.exp %296 : vector<2x32xf32>
    %cst_85 = arith.constant 1.000000e+00 : f32
    %298 = vector.broadcast %cst_85 : f32 to vector<2x32xf32>
    %299 = arith.addf %298, %297 : vector<2x32xf32>
    %300 = arith.divf %298, %299 : vector<2x32xf32>
    %301 = arith.mulf %292, %277 : vector<2x32xf32>
    %302 = arith.mulf %286, %294 : vector<2x32xf32>
    %303 = arith.addf %301, %302 : vector<2x32xf32>
    %304 = math.tanh %303 : vector<2x32xf32>
    %305 = arith.mulf %300, %304 : vector<2x32xf32>
    %306 = vector.extract_strided_slice %274 {offsets = [2, 0], sizes = [2, 128], strides = [1, 1]} : vector<16x128xf32> to vector<2x128xf32>
    %cst_86 = arith.constant dense<0.000000e+00> : vector<2x128xf32>
    %307 = tpu.matmul %305, %275, %cst_86 {dimension_numbers = #tpu.dot_dimension_numbers<[1], [0], [0], [1], [0, 0, 1, 1], [], []>} : vector<2x32xf32>, vector<32x128xf32>, vector<2x128xf32> -> vector<2x128xf32>
    %308 = arith.addf %306, %307 : vector<2x128xf32>
    %309 = vector.extract_strided_slice %308 {offsets = [0, 0], sizes = [2, 32], strides = [1, 1]} : vector<2x128xf32> to vector<2x32xf32>
    %310 = arith.negf %309 : vector<2x32xf32>
    %311 = math.exp %310 : vector<2x32xf32>
    %cst_87 = arith.constant 1.000000e+00 : f32
    %312 = vector.broadcast %cst_87 : f32 to vector<2x32xf32>
    %313 = arith.addf %312, %311 : vector<2x32xf32>
    %314 = arith.divf %312, %313 : vector<2x32xf32>
    %315 = vector.extract_strided_slice %308 {offsets = [0, 32], sizes = [2, 32], strides = [1, 1]} : vector<2x128xf32> to vector<2x32xf32>
    %316 = arith.negf %315 : vector<2x32xf32>
    %317 = math.exp %316 : vector<2x32xf32>
    %cst_88 = arith.constant 1.000000e+00 : f32
    %318 = vector.broadcast %cst_88 : f32 to vector<2x32xf32>
    %319 = arith.addf %318, %317 : vector<2x32xf32>
    %320 = arith.divf %318, %319 : vector<2x32xf32>
    %321 = vector.extract_strided_slice %308 {offsets = [0, 64], sizes = [2, 32], strides = [1, 1]} : vector<2x128xf32> to vector<2x32xf32>
    %322 = math.tanh %321 : vector<2x32xf32>
    %323 = vector.extract_strided_slice %308 {offsets = [0, 96], sizes = [2, 32], strides = [1, 1]} : vector<2x128xf32> to vector<2x32xf32>
    %324 = arith.negf %323 : vector<2x32xf32>
    %325 = math.exp %324 : vector<2x32xf32>
    %cst_89 = arith.constant 1.000000e+00 : f32
    %326 = vector.broadcast %cst_89 : f32 to vector<2x32xf32>
    %327 = arith.addf %326, %325 : vector<2x32xf32>
    %328 = arith.divf %326, %327 : vector<2x32xf32>
    %329 = arith.mulf %320, %303 : vector<2x32xf32>
    %330 = arith.mulf %314, %322 : vector<2x32xf32>
    %331 = arith.addf %329, %330 : vector<2x32xf32>
    %332 = math.tanh %331 : vector<2x32xf32>
    %333 = arith.mulf %328, %332 : vector<2x32xf32>
    %334 = vector.extract_strided_slice %274 {offsets = [4, 0], sizes = [2, 128], strides = [1, 1]} : vector<16x128xf32> to vector<2x128xf32>
    %cst_90 = arith.constant dense<0.000000e+00> : vector<2x128xf32>
    %335 = tpu.matmul %333, %275, %cst_90 {dimension_numbers = #tpu.dot_dimension_numbers<[1], [0], [0], [1], [0, 0, 1, 1], [], []>} : vector<2x32xf32>, vector<32x128xf32>, vector<2x128xf32> -> vector<2x128xf32>
    %336 = arith.addf %334, %335 : vector<2x128xf32>
    %337 = vector.extract_strided_slice %336 {offsets = [0, 0], sizes = [2, 32], strides = [1, 1]} : vector<2x128xf32> to vector<2x32xf32>
    %338 = arith.negf %337 : vector<2x32xf32>
    %339 = math.exp %338 : vector<2x32xf32>
    %cst_91 = arith.constant 1.000000e+00 : f32
    %340 = vector.broadcast %cst_91 : f32 to vector<2x32xf32>
    %341 = arith.addf %340, %339 : vector<2x32xf32>
    %342 = arith.divf %340, %341 : vector<2x32xf32>
    %343 = vector.extract_strided_slice %336 {offsets = [0, 32], sizes = [2, 32], strides = [1, 1]} : vector<2x128xf32> to vector<2x32xf32>
    %344 = arith.negf %343 : vector<2x32xf32>
    %345 = math.exp %344 : vector<2x32xf32>
    %cst_92 = arith.constant 1.000000e+00 : f32
    %346 = vector.broadcast %cst_92 : f32 to vector<2x32xf32>
    %347 = arith.addf %346, %345 : vector<2x32xf32>
    %348 = arith.divf %346, %347 : vector<2x32xf32>
    %349 = vector.extract_strided_slice %336 {offsets = [0, 64], sizes = [2, 32], strides = [1, 1]} : vector<2x128xf32> to vector<2x32xf32>
    %350 = math.tanh %349 : vector<2x32xf32>
    %351 = vector.extract_strided_slice %336 {offsets = [0, 96], sizes = [2, 32], strides = [1, 1]} : vector<2x128xf32> to vector<2x32xf32>
    %352 = arith.negf %351 : vector<2x32xf32>
    %353 = math.exp %352 : vector<2x32xf32>
    %cst_93 = arith.constant 1.000000e+00 : f32
    %354 = vector.broadcast %cst_93 : f32 to vector<2x32xf32>
    %355 = arith.addf %354, %353 : vector<2x32xf32>
    %356 = arith.divf %354, %355 : vector<2x32xf32>
    %357 = arith.mulf %348, %331 : vector<2x32xf32>
    %358 = arith.mulf %342, %350 : vector<2x32xf32>
    %359 = arith.addf %357, %358 : vector<2x32xf32>
    %360 = math.tanh %359 : vector<2x32xf32>
    %361 = arith.mulf %356, %360 : vector<2x32xf32>
    %362 = vector.extract_strided_slice %274 {offsets = [6, 0], sizes = [2, 128], strides = [1, 1]} : vector<16x128xf32> to vector<2x128xf32>
    %cst_94 = arith.constant dense<0.000000e+00> : vector<2x128xf32>
    %363 = tpu.matmul %361, %275, %cst_94 {dimension_numbers = #tpu.dot_dimension_numbers<[1], [0], [0], [1], [0, 0, 1, 1], [], []>} : vector<2x32xf32>, vector<32x128xf32>, vector<2x128xf32> -> vector<2x128xf32>
    %364 = arith.addf %362, %363 : vector<2x128xf32>
    %365 = vector.extract_strided_slice %364 {offsets = [0, 0], sizes = [2, 32], strides = [1, 1]} : vector<2x128xf32> to vector<2x32xf32>
    %366 = arith.negf %365 : vector<2x32xf32>
    %367 = math.exp %366 : vector<2x32xf32>
    %cst_95 = arith.constant 1.000000e+00 : f32
    %368 = vector.broadcast %cst_95 : f32 to vector<2x32xf32>
    %369 = arith.addf %368, %367 : vector<2x32xf32>
    %370 = arith.divf %368, %369 : vector<2x32xf32>
    %371 = vector.extract_strided_slice %364 {offsets = [0, 32], sizes = [2, 32], strides = [1, 1]} : vector<2x128xf32> to vector<2x32xf32>
    %372 = arith.negf %371 : vector<2x32xf32>
    %373 = math.exp %372 : vector<2x32xf32>
    %cst_96 = arith.constant 1.000000e+00 : f32
    %374 = vector.broadcast %cst_96 : f32 to vector<2x32xf32>
    %375 = arith.addf %374, %373 : vector<2x32xf32>
    %376 = arith.divf %374, %375 : vector<2x32xf32>
    %377 = vector.extract_strided_slice %364 {offsets = [0, 64], sizes = [2, 32], strides = [1, 1]} : vector<2x128xf32> to vector<2x32xf32>
    %378 = math.tanh %377 : vector<2x32xf32>
    %379 = vector.extract_strided_slice %364 {offsets = [0, 96], sizes = [2, 32], strides = [1, 1]} : vector<2x128xf32> to vector<2x32xf32>
    %380 = arith.negf %379 : vector<2x32xf32>
    %381 = math.exp %380 : vector<2x32xf32>
    %cst_97 = arith.constant 1.000000e+00 : f32
    %382 = vector.broadcast %cst_97 : f32 to vector<2x32xf32>
    %383 = arith.addf %382, %381 : vector<2x32xf32>
    %384 = arith.divf %382, %383 : vector<2x32xf32>
    %385 = arith.mulf %376, %359 : vector<2x32xf32>
    %386 = arith.mulf %370, %378 : vector<2x32xf32>
    %387 = arith.addf %385, %386 : vector<2x32xf32>
    %388 = math.tanh %387 : vector<2x32xf32>
    %389 = arith.mulf %384, %388 : vector<2x32xf32>
    %390 = vector.extract_strided_slice %274 {offsets = [8, 0], sizes = [2, 128], strides = [1, 1]} : vector<16x128xf32> to vector<2x128xf32>
    %cst_98 = arith.constant dense<0.000000e+00> : vector<2x128xf32>
    %391 = tpu.matmul %389, %275, %cst_98 {dimension_numbers = #tpu.dot_dimension_numbers<[1], [0], [0], [1], [0, 0, 1, 1], [], []>} : vector<2x32xf32>, vector<32x128xf32>, vector<2x128xf32> -> vector<2x128xf32>
    %392 = arith.addf %390, %391 : vector<2x128xf32>
    %393 = vector.extract_strided_slice %392 {offsets = [0, 0], sizes = [2, 32], strides = [1, 1]} : vector<2x128xf32> to vector<2x32xf32>
    %394 = arith.negf %393 : vector<2x32xf32>
    %395 = math.exp %394 : vector<2x32xf32>
    %cst_99 = arith.constant 1.000000e+00 : f32
    %396 = vector.broadcast %cst_99 : f32 to vector<2x32xf32>
    %397 = arith.addf %396, %395 : vector<2x32xf32>
    %398 = arith.divf %396, %397 : vector<2x32xf32>
    %399 = vector.extract_strided_slice %392 {offsets = [0, 32], sizes = [2, 32], strides = [1, 1]} : vector<2x128xf32> to vector<2x32xf32>
    %400 = arith.negf %399 : vector<2x32xf32>
    %401 = math.exp %400 : vector<2x32xf32>
    %cst_100 = arith.constant 1.000000e+00 : f32
    %402 = vector.broadcast %cst_100 : f32 to vector<2x32xf32>
    %403 = arith.addf %402, %401 : vector<2x32xf32>
    %404 = arith.divf %402, %403 : vector<2x32xf32>
    %405 = vector.extract_strided_slice %392 {offsets = [0, 64], sizes = [2, 32], strides = [1, 1]} : vector<2x128xf32> to vector<2x32xf32>
    %406 = math.tanh %405 : vector<2x32xf32>
    %407 = vector.extract_strided_slice %392 {offsets = [0, 96], sizes = [2, 32], strides = [1, 1]} : vector<2x128xf32> to vector<2x32xf32>
    %408 = arith.negf %407 : vector<2x32xf32>
    %409 = math.exp %408 : vector<2x32xf32>
    %cst_101 = arith.constant 1.000000e+00 : f32
    %410 = vector.broadcast %cst_101 : f32 to vector<2x32xf32>
    %411 = arith.addf %410, %409 : vector<2x32xf32>
    %412 = arith.divf %410, %411 : vector<2x32xf32>
    %413 = arith.mulf %404, %387 : vector<2x32xf32>
    %414 = arith.mulf %398, %406 : vector<2x32xf32>
    %415 = arith.addf %413, %414 : vector<2x32xf32>
    %416 = math.tanh %415 : vector<2x32xf32>
    %417 = arith.mulf %412, %416 : vector<2x32xf32>
    %418 = vector.extract_strided_slice %274 {offsets = [10, 0], sizes = [2, 128], strides = [1, 1]} : vector<16x128xf32> to vector<2x128xf32>
    %cst_102 = arith.constant dense<0.000000e+00> : vector<2x128xf32>
    %419 = tpu.matmul %417, %275, %cst_102 {dimension_numbers = #tpu.dot_dimension_numbers<[1], [0], [0], [1], [0, 0, 1, 1], [], []>} : vector<2x32xf32>, vector<32x128xf32>, vector<2x128xf32> -> vector<2x128xf32>
    %420 = arith.addf %418, %419 : vector<2x128xf32>
    %421 = vector.extract_strided_slice %420 {offsets = [0, 0], sizes = [2, 32], strides = [1, 1]} : vector<2x128xf32> to vector<2x32xf32>
    %422 = arith.negf %421 : vector<2x32xf32>
    %423 = math.exp %422 : vector<2x32xf32>
    %cst_103 = arith.constant 1.000000e+00 : f32
    %424 = vector.broadcast %cst_103 : f32 to vector<2x32xf32>
    %425 = arith.addf %424, %423 : vector<2x32xf32>
    %426 = arith.divf %424, %425 : vector<2x32xf32>
    %427 = vector.extract_strided_slice %420 {offsets = [0, 32], sizes = [2, 32], strides = [1, 1]} : vector<2x128xf32> to vector<2x32xf32>
    %428 = arith.negf %427 : vector<2x32xf32>
    %429 = math.exp %428 : vector<2x32xf32>
    %cst_104 = arith.constant 1.000000e+00 : f32
    %430 = vector.broadcast %cst_104 : f32 to vector<2x32xf32>
    %431 = arith.addf %430, %429 : vector<2x32xf32>
    %432 = arith.divf %430, %431 : vector<2x32xf32>
    %433 = vector.extract_strided_slice %420 {offsets = [0, 64], sizes = [2, 32], strides = [1, 1]} : vector<2x128xf32> to vector<2x32xf32>
    %434 = math.tanh %433 : vector<2x32xf32>
    %435 = vector.extract_strided_slice %420 {offsets = [0, 96], sizes = [2, 32], strides = [1, 1]} : vector<2x128xf32> to vector<2x32xf32>
    %436 = arith.negf %435 : vector<2x32xf32>
    %437 = math.exp %436 : vector<2x32xf32>
    %cst_105 = arith.constant 1.000000e+00 : f32
    %438 = vector.broadcast %cst_105 : f32 to vector<2x32xf32>
    %439 = arith.addf %438, %437 : vector<2x32xf32>
    %440 = arith.divf %438, %439 : vector<2x32xf32>
    %441 = arith.mulf %432, %415 : vector<2x32xf32>
    %442 = arith.mulf %426, %434 : vector<2x32xf32>
    %443 = arith.addf %441, %442 : vector<2x32xf32>
    %444 = math.tanh %443 : vector<2x32xf32>
    %445 = arith.mulf %440, %444 : vector<2x32xf32>
    %446 = vector.extract_strided_slice %274 {offsets = [12, 0], sizes = [2, 128], strides = [1, 1]} : vector<16x128xf32> to vector<2x128xf32>
    %cst_106 = arith.constant dense<0.000000e+00> : vector<2x128xf32>
    %447 = tpu.matmul %445, %275, %cst_106 {dimension_numbers = #tpu.dot_dimension_numbers<[1], [0], [0], [1], [0, 0, 1, 1], [], []>} : vector<2x32xf32>, vector<32x128xf32>, vector<2x128xf32> -> vector<2x128xf32>
    %448 = arith.addf %446, %447 : vector<2x128xf32>
    %449 = vector.extract_strided_slice %448 {offsets = [0, 0], sizes = [2, 32], strides = [1, 1]} : vector<2x128xf32> to vector<2x32xf32>
    %450 = arith.negf %449 : vector<2x32xf32>
    %451 = math.exp %450 : vector<2x32xf32>
    %cst_107 = arith.constant 1.000000e+00 : f32
    %452 = vector.broadcast %cst_107 : f32 to vector<2x32xf32>
    %453 = arith.addf %452, %451 : vector<2x32xf32>
    %454 = arith.divf %452, %453 : vector<2x32xf32>
    %455 = vector.extract_strided_slice %448 {offsets = [0, 32], sizes = [2, 32], strides = [1, 1]} : vector<2x128xf32> to vector<2x32xf32>
    %456 = arith.negf %455 : vector<2x32xf32>
    %457 = math.exp %456 : vector<2x32xf32>
    %cst_108 = arith.constant 1.000000e+00 : f32
    %458 = vector.broadcast %cst_108 : f32 to vector<2x32xf32>
    %459 = arith.addf %458, %457 : vector<2x32xf32>
    %460 = arith.divf %458, %459 : vector<2x32xf32>
    %461 = vector.extract_strided_slice %448 {offsets = [0, 64], sizes = [2, 32], strides = [1, 1]} : vector<2x128xf32> to vector<2x32xf32>
    %462 = math.tanh %461 : vector<2x32xf32>
    %463 = vector.extract_strided_slice %448 {offsets = [0, 96], sizes = [2, 32], strides = [1, 1]} : vector<2x128xf32> to vector<2x32xf32>
    %464 = arith.negf %463 : vector<2x32xf32>
    %465 = math.exp %464 : vector<2x32xf32>
    %cst_109 = arith.constant 1.000000e+00 : f32
    %466 = vector.broadcast %cst_109 : f32 to vector<2x32xf32>
    %467 = arith.addf %466, %465 : vector<2x32xf32>
    %468 = arith.divf %466, %467 : vector<2x32xf32>
    %469 = arith.mulf %460, %443 : vector<2x32xf32>
    %470 = arith.mulf %454, %462 : vector<2x32xf32>
    %471 = arith.addf %469, %470 : vector<2x32xf32>
    %472 = math.tanh %471 : vector<2x32xf32>
    %473 = arith.mulf %468, %472 : vector<2x32xf32>
    %474 = vector.extract_strided_slice %274 {offsets = [14, 0], sizes = [2, 128], strides = [1, 1]} : vector<16x128xf32> to vector<2x128xf32>
    %cst_110 = arith.constant dense<0.000000e+00> : vector<2x128xf32>
    %475 = tpu.matmul %473, %275, %cst_110 {dimension_numbers = #tpu.dot_dimension_numbers<[1], [0], [0], [1], [0, 0, 1, 1], [], []>} : vector<2x32xf32>, vector<32x128xf32>, vector<2x128xf32> -> vector<2x128xf32>
    %476 = arith.addf %474, %475 : vector<2x128xf32>
    %477 = vector.extract_strided_slice %476 {offsets = [0, 0], sizes = [2, 32], strides = [1, 1]} : vector<2x128xf32> to vector<2x32xf32>
    %478 = arith.negf %477 : vector<2x32xf32>
    %479 = math.exp %478 : vector<2x32xf32>
    %cst_111 = arith.constant 1.000000e+00 : f32
    %480 = vector.broadcast %cst_111 : f32 to vector<2x32xf32>
    %481 = arith.addf %480, %479 : vector<2x32xf32>
    %482 = arith.divf %480, %481 : vector<2x32xf32>
    %483 = vector.extract_strided_slice %476 {offsets = [0, 32], sizes = [2, 32], strides = [1, 1]} : vector<2x128xf32> to vector<2x32xf32>
    %484 = arith.negf %483 : vector<2x32xf32>
    %485 = math.exp %484 : vector<2x32xf32>
    %cst_112 = arith.constant 1.000000e+00 : f32
    %486 = vector.broadcast %cst_112 : f32 to vector<2x32xf32>
    %487 = arith.addf %486, %485 : vector<2x32xf32>
    %488 = arith.divf %486, %487 : vector<2x32xf32>
    %489 = vector.extract_strided_slice %476 {offsets = [0, 64], sizes = [2, 32], strides = [1, 1]} : vector<2x128xf32> to vector<2x32xf32>
    %490 = math.tanh %489 : vector<2x32xf32>
    %491 = vector.extract_strided_slice %476 {offsets = [0, 96], sizes = [2, 32], strides = [1, 1]} : vector<2x128xf32> to vector<2x32xf32>
    %492 = arith.negf %491 : vector<2x32xf32>
    %493 = math.exp %492 : vector<2x32xf32>
    %cst_113 = arith.constant 1.000000e+00 : f32
    %494 = vector.broadcast %cst_113 : f32 to vector<2x32xf32>
    %495 = arith.addf %494, %493 : vector<2x32xf32>
    %496 = arith.divf %494, %495 : vector<2x32xf32>
    %497 = arith.mulf %488, %471 : vector<2x32xf32>
    %498 = arith.mulf %482, %490 : vector<2x32xf32>
    %499 = arith.addf %497, %498 : vector<2x32xf32>
    %500 = math.tanh %499 : vector<2x32xf32>
    %501 = arith.mulf %496, %500 : vector<2x32xf32>
    %502 = vector.extract_strided_slice %265 {offsets = [14, 0], sizes = [2, 32], strides = [1, 1]} : vector<16x32xf32> to vector<2x32xf32>
    %c0_114 = arith.constant 0 : index
    %c0_115 = arith.constant 0 : index
    %503 = vector.load %arg8[%c0_114, %c0_115] : memref<32x128xf32, #tpu.memory_space<vmem>>, vector<32x128xf32>
    %cst_116 = arith.constant dense<0.000000e+00> : vector<2x128xf32>
    %504 = tpu.matmul %502, %503, %cst_116 {dimension_numbers = #tpu.dot_dimension_numbers<[1], [0], [0], [1], [0, 0, 1, 1], [], []>} : vector<2x32xf32>, vector<32x128xf32>, vector<2x128xf32> -> vector<2x128xf32>
    %505 = vector.extract_strided_slice %266 {offsets = [14, 0], sizes = [2, 32], strides = [1, 1]} : vector<16x32xf32> to vector<2x32xf32>
    %c0_117 = arith.constant 0 : index
    %c0_118 = arith.constant 0 : index
    %506 = vector.load %arg9[%c0_117, %c0_118] : memref<32x128xf32, #tpu.memory_space<vmem>>, vector<32x128xf32>
    %cst_119 = arith.constant dense<0.000000e+00> : vector<2x128xf32>
    %507 = tpu.matmul %505, %506, %cst_119 {dimension_numbers = #tpu.dot_dimension_numbers<[1], [0], [0], [1], [0, 0, 1, 1], [], []>} : vector<2x32xf32>, vector<32x128xf32>, vector<2x128xf32> -> vector<2x128xf32>
    %508 = arith.addf %504, %507 : vector<2x128xf32>
    %c0_120 = arith.constant 0 : index
    %c0_121 = arith.constant 0 : index
    %509 = vector.load %arg10[%c0_120, %c0_121] : memref<1x128xf32, #tpu.memory_space<vmem>>, vector<1x128xf32>
    %510 = vector.broadcast %509 : vector<1x128xf32> to vector<2x128xf32>
    %511 = arith.addf %508, %510 : vector<2x128xf32>
    %cst_122 = arith.constant 0.000000e+00 : f32
    %512 = vector.broadcast %cst_122 : f32 to vector<2x32xf32>
    %513 = vector.extract_strided_slice %511 {offsets = [0, 0], sizes = [2, 32], strides = [1, 1]} : vector<2x128xf32> to vector<2x32xf32>
    %514 = arith.negf %513 : vector<2x32xf32>
    %515 = math.exp %514 : vector<2x32xf32>
    %cst_123 = arith.constant 1.000000e+00 : f32
    %516 = vector.broadcast %cst_123 : f32 to vector<2x32xf32>
    %517 = arith.addf %516, %515 : vector<2x32xf32>
    %518 = arith.divf %516, %517 : vector<2x32xf32>
    %519 = vector.extract_strided_slice %511 {offsets = [0, 32], sizes = [2, 32], strides = [1, 1]} : vector<2x128xf32> to vector<2x32xf32>
    %520 = arith.negf %519 : vector<2x32xf32>
    %521 = math.exp %520 : vector<2x32xf32>
    %cst_124 = arith.constant 1.000000e+00 : f32
    %522 = vector.broadcast %cst_124 : f32 to vector<2x32xf32>
    %523 = arith.addf %522, %521 : vector<2x32xf32>
    %524 = arith.divf %522, %523 : vector<2x32xf32>
    %525 = vector.extract_strided_slice %511 {offsets = [0, 64], sizes = [2, 32], strides = [1, 1]} : vector<2x128xf32> to vector<2x32xf32>
    %526 = math.tanh %525 : vector<2x32xf32>
    %527 = vector.extract_strided_slice %511 {offsets = [0, 96], sizes = [2, 32], strides = [1, 1]} : vector<2x128xf32> to vector<2x32xf32>
    %528 = arith.negf %527 : vector<2x32xf32>
    %529 = math.exp %528 : vector<2x32xf32>
    %cst_125 = arith.constant 1.000000e+00 : f32
    %530 = vector.broadcast %cst_125 : f32 to vector<2x32xf32>
    %531 = arith.addf %530, %529 : vector<2x32xf32>
    %532 = arith.divf %530, %531 : vector<2x32xf32>
    %533 = arith.mulf %524, %512 : vector<2x32xf32>
    %534 = arith.mulf %518, %526 : vector<2x32xf32>
    %535 = arith.addf %533, %534 : vector<2x32xf32>
    %536 = math.tanh %535 : vector<2x32xf32>
    %537 = arith.mulf %532, %536 : vector<2x32xf32>
    %538 = tpu.concatenate %501, %537 in 1 : vector<2x32xf32>, vector<2x32xf32> -> vector<2x64xf32>
    %c0_126 = arith.constant 0 : index
    %c0_127 = arith.constant 0 : index
    %539 = vector.load %arg11[%c0_126, %c0_127] : memref<64x10xf32, #tpu.memory_space<vmem>>, vector<64x10xf32>
    %cst_128 = arith.constant dense<0.000000e+00> : vector<2x10xf32>
    %540 = tpu.matmul %538, %539, %cst_128 {dimension_numbers = #tpu.dot_dimension_numbers<[1], [0], [0], [1], [0, 0, 1, 1], [], []>} : vector<2x64xf32>, vector<64x10xf32>, vector<2x10xf32> -> vector<2x10xf32>
    %c0_129 = arith.constant 0 : index
    %c0_130 = arith.constant 0 : index
    %541 = vector.load %arg12[%c0_129, %c0_130] : memref<1x10xf32, #tpu.memory_space<vmem>>, vector<1x10xf32>
    %542 = vector.broadcast %541 : vector<1x10xf32> to vector<2x10xf32>
    %543 = arith.addf %540, %542 : vector<2x10xf32>
    %c0_131 = arith.constant 0 : index
    %c0_132 = arith.constant 0 : index
    %544 = vector.load %arg13[%c0_131, %c0_132] : memref<2x10xf32, #tpu.memory_space<vmem>>, vector<2x10xf32>
    tpu.vector_store %arg13[%c0_131, %c0_132], %543 {strides = array<i32>} : memref<2x10xf32, #tpu.memory_space<vmem>>, vector<2x10xf32>,
    return
  }
}

</mosaic_0001>

<llo_original>
// kernel: brnn_forward.1
$region0: #{brnn_forward.1}
  #allocation0 [shape = 'u32[]', space=smem, size = 0x4, offset = 0x4, fixed_abs, tag = 'smem constant byte address 0x4 - core index']
  #allocation1 [shape = 'u32[72,128]{1,0:T(1,128)}', space=vmem, size = 0x9000, scoped, tag = 'internal scratch']
  #allocation2 [shape = 'f32[16,32]{1,0:T(8,128)}', space=vmem, size = 0x2000, scoped, tag = 'scratch operand']
  #allocation3 [shape = 'f32[16,32]{1,0:T(8,128)}', space=vmem, size = 0x2000, scoped, tag = 'scratch operand']
  %s0 = inlined_call_operand.vmem [shape: f32[16,56], index: 0, kind: input, shape index: {}]
  %s1 = inlined_call_operand.vmem [shape: f32[56,256], index: 1, kind: input, shape index: {}]
  %s2 = inlined_call_operand.vmem [shape: f32[64,256], index: 2, kind: input, shape index: {}]
  %s3 = inlined_call_operand.vmem [shape: f32[1,256], index: 3, kind: input, shape index: {}]
  %s4 = inlined_call_operand.vmem [shape: f32[32,128], index: 4, kind: input, shape index: {}]
  %s5 = inlined_call_operand.vmem [shape: f32[32,128], index: 5, kind: input, shape index: {}]
  %s6 = inlined_call_operand.vmem [shape: f32[32,128], index: 6, kind: input, shape index: {}]
  %s7 = inlined_call_operand.vmem [shape: f32[1,128], index: 7, kind: input, shape index: {}]
  %s8 = inlined_call_operand.vmem [shape: f32[32,128], index: 8, kind: input, shape index: {}]
  %s9 = inlined_call_operand.vmem [shape: f32[32,128], index: 9, kind: input, shape index: {}]
  %s10 = inlined_call_operand.vmem [shape: f32[1,128], index: 10, kind: input, shape index: {}]
  %s11 = inlined_call_operand.vmem [shape: f32[64,10], index: 11, kind: input, shape index: {}]
  %s12 = inlined_call_operand.vmem [shape: f32[1,10], index: 12, kind: input, shape index: {}]
  %s13 = inlined_call_operand.hbm [shape: f32[2,10], index: 13, kind: output, shape index: {}]
  %s14 = sld [smem:[#allocation0]]
  $region62: #{brnn_forward.1} parent=0
    _
  %s16 = ssub.s32 1, %s14
  %s17 = scalar_select 0, %s16, %s14
  $region1: #{brnn_forward.1} parent=0
    #allocation4 [shape = 'u8[1024]{0}', space=vmem, size = 0x400, scoped, tag = 'output window, operand 0, single buffered']
    #allocation5 [shape = 's32[1]{0}', space=sflag, size = 0x4, scoped, tag = 'scoped memory for brnn_forward.1']
    %18 = vsyncpa [#allocation5], 0
    // Predicated region
    $region2: #{brnn_forward.1} parent=1 // pred_check
      _
    $region3: #{brnn_forward.1} parent=1 // pred_check_branch
      %20 = sbr.rel (0) target = $region5
    $region4: #{brnn_forward.1} parent=1 // pred_region
      _
    $region5: #{brnn_forward.1} parent=1 // pred_fallthru
      _
    // Predicated region
    $region6: #{brnn_forward.1} parent=1 // pred_check
      _
    $region7: #{brnn_forward.1} parent=1 // pred_check_branch
      %22 = sbr.rel (0) target = $region9
    $region8: #{brnn_forward.1} parent=1 // pred_region
      _
    $region9: #{brnn_forward.1} parent=1 // pred_fallthru
      _
    // Predicated region
    $region10: #{brnn_forward.1} parent=1 // pred_check
      _
    $region11: #{brnn_forward.1} parent=1 // pred_check_branch
      %24 = sbr.rel (0) target = $region13
    $region12: #{brnn_forward.1} parent=1 // pred_region
      _
    $region13: #{brnn_forward.1} parent=1 // pred_fallthru
      _
    // Predicated region
    $region14: #{brnn_forward.1} parent=1 // pred_check
      _
    $region15: #{brnn_forward.1} parent=1 // pred_check_branch
      %26 = sbr.rel (0) target = $region17
    $region16: #{brnn_forward.1} parent=1 // pred_region
      _
    $region17: #{brnn_forward.1} parent=1 // pred_fallthru
      _
    // Predicated region
    $region18: #{brnn_forward.1} parent=1 // pred_check
      _
    $region19: #{brnn_forward.1} parent=1 // pred_check_branch
      %28 = sbr.rel (0) target = $region21
    $region20: #{brnn_forward.1} parent=1 // pred_region
      _
    $region21: #{brnn_forward.1} parent=1 // pred_fallthru
      _
    // Predicated region
    $region22: #{brnn_forward.1} parent=1 // pred_check
      _
    $region23: #{brnn_forward.1} parent=1 // pred_check_branch
      %30 = sbr.rel (0) target = $region25
    $region24: #{brnn_forward.1} parent=1 // pred_region
      _
    $region25: #{brnn_forward.1} parent=1 // pred_fallthru
      _
    // Predicated region
    $region26: #{brnn_forward.1} parent=1 // pred_check
      _
    $region27: #{brnn_forward.1} parent=1 // pred_check_branch
      %32 = sbr.rel (0) target = $region29
    $region28: #{brnn_forward.1} parent=1 // pred_region
      _
    $region29: #{brnn_forward.1} parent=1 // pred_fallthru
      _
    // Predicated region
    $region30: #{brnn_forward.1} parent=1 // pred_check
      _
    $region31: #{brnn_forward.1} parent=1 // pred_check_branch
      %34 = sbr.rel (0) target = $region33
    $region32: #{brnn_forward.1} parent=1 // pred_region
      _
    $region33: #{brnn_forward.1} parent=1 // pred_fallthru
      _
    // Predicated region
    $region34: #{brnn_forward.1} parent=1 // pred_check
      _
    $region35: #{brnn_forward.1} parent=1 // pred_check_branch
      %36 = sbr.rel (0) target = $region37
    $region36: #{brnn_forward.1} parent=1 // pred_region
      _
    $region37: #{brnn_forward.1} parent=1 // pred_fallthru
      _
    // Predicated region
    $region38: #{brnn_forward.1} parent=1 // pred_check
      _
    $region39: #{brnn_forward.1} parent=1 // pred_check_branch
      %38 = sbr.rel (0) target = $region41
    $region40: #{brnn_forward.1} parent=1 // pred_region
      _
    $region41: #{brnn_forward.1} parent=1 // pred_fallthru
      _
    // Predicated region
    $region42: #{brnn_forward.1} parent=1 // pred_check
      _
    $region43: #{brnn_forward.1} parent=1 // pred_check_branch
      %40 = sbr.rel (0) target = $region45
    $region44: #{brnn_forward.1} parent=1 // pred_region
      _
    $region45: #{brnn_forward.1} parent=1 // pred_fallthru
      _
    // Predicated region
    $region46: #{brnn_forward.1} parent=1 // pred_check
      _
    $region47: #{brnn_forward.1} parent=1 // pred_check_branch
      %42 = sbr.rel (0) target = $region49
    $region48: #{brnn_forward.1} parent=1 // pred_region
      _
    $region49: #{brnn_forward.1} parent=1 // pred_fallthru
      _
    // Predicated region
    $region50: #{brnn_forward.1} parent=1 // pred_check
      _
    $region51: #{brnn_forward.1} parent=1 // pred_check_branch
      %44 = sbr.rel (0) target = $region53
    $region52: #{brnn_forward.1} parent=1 // pred_region
      _
    $region53: #{brnn_forward.1} parent=1 // pred_fallthru
      _
    %v45 = vld [vmem:[%s0] sm:$0xff]
    %v46 = vld [vmem:[%s0 + $0x8] sm:$0xff]
    %v47 = vld [vmem:[%s1] sm:$0xff]
    %v48 = vld [vmem:[%s1 + $0x8] sm:$0xff]
    %v49 = vld [vmem:[%s1 + $0x10] sm:$0xff]
    %v50 = vld [vmem:[%s1 + $0x18] sm:$0xff]
    %v51 = vld [vmem:[%s1 + $0x20] sm:$0xff]
    %v52 = vld [vmem:[%s1 + $0x28] sm:$0xff]
    %v53 = vld [vmem:[%s1 + $0x30] sm:$0xff]
    %v54 = vld [vmem:[%s1 + $0x38] sm:$0xff]
    %v55 = vld [vmem:[%s1 + $0x40] sm:$0xff]
    %v56 = vld [vmem:[%s1 + $0x48] sm:$0xff]
    %v57 = vld [vmem:[%s1 + $0x50] sm:$0xff]
    %v58 = vld [vmem:[%s1 + $0x58] sm:$0xff]
    %v59 = vld [vmem:[%s1 + $0x60] sm:$0xff]
    %v60 = vld [vmem:[%s1 + $0x68] sm:$0xff]
    %v61 = vld [vmem:[%s3] sm:$0x3]
    %v63 = vperm.slane %v61, 0
    %v64 = vperm.slane %v61, 1
    %vm67 = vcmask 457728
    %v69 = vsel %vm67, %v45, 0
    %v72 = vsel %vm67, %v46, 0
    %74 = vmatpush.msra.mxu0 0.0
    %75 = vmatpush.msra.mxu0 0.0
    %76 = vmatpush.msra.mxu0 0.0
    %77 = vmatpush.msra.mxu0 0.0
    %78 = vmatpush.msra.mxu0 0.0
    %79 = vmatpush.msra.mxu0 0.0
    %80 = vmatpush.msra.mxu0 0.0
    %81 = vmatpush.msra.mxu0 0.0
    %82 = vmatpush.msra.mxu0 0.0
    %83 = vmatpush.msra.mxu0 %v59
    %84 = vmatpush.msra.mxu0 %v57
    %85 = vmatpush.msra.mxu0 %v55
    %86 = vmatpush.msra.mxu0 %v53
    %87 = vmatpush.msra.mxu0 %v51
    %88 = vmatpush.msra.mxu0 %v49
    %89 = vmatpush.msra.mxu0 %v47
    %90 = vmatmul.f32.gmra.mxu0 %v69
    %v91 = vpop.f32.mrf.mxu0
    %v92 = vadd.f32 %v63, %v91
    %93 = vmatmul.f32.gmra.mxu0 %v72
    %v94 = vpop.f32.mrf.mxu0
    %v95 = vadd.f32 %v63, %v94
    %96 = vdwg.mxu0
    %97 = vmatpush.msra.mxu0 0.0
    %98 = vmatpush.msra.mxu0 0.0
    %99 = vmatpush.msra.mxu0 0.0
    %100 = vmatpush.msra.mxu0 0.0
    %101 = vmatpush.msra.mxu0 0.0
    %102 = vmatpush.msra.mxu0 0.0
    %103 = vmatpush.msra.mxu0 0.0
    %104 = vmatpush.msra.mxu0 0.0
    %105 = vmatpush.msra.mxu0 0.0
    %106 = vmatpush.msra.mxu0 %v60
    %107 = vmatpush.msra.mxu0 %v58
    %108 = vmatpush.msra.mxu0 %v56
    %109 = vmatpush.msra.mxu0 %v54
    %110 = vmatpush.msra.mxu0 %v52
    %111 = vmatpush.msra.mxu0 %v50
    %112 = vmatpush.msra.mxu0 %v48
    %113 = vmatmul.f32.gmra.mxu0 %v69
    %v114 = vpop.f32.mrf.mxu0
    %v115 = vadd.f32 %v64, %v114
    %116 = vmatmul.f32.gmra.mxu0 %v72
    %v117 = vpop.f32.mrf.mxu0
    %v118 = vadd.f32 %v64, %v117
    %119 = vdwg.mxu0
    %v120 = vld [vmem:[%s2] sm:$0xff]
    %v121 = vld [vmem:[%s2 + $0x8] sm:$0xff]
    %v122 = vld [vmem:[%s2 + $0x10] sm:$0xff]
    %v123 = vld [vmem:[%s2 + $0x18] sm:$0xff]
    %v124 = vld [vmem:[%s2 + $0x20] sm:$0xff]
    %v125 = vld [vmem:[%s2 + $0x28] sm:$0xff]
    %v126 = vld [vmem:[%s2 + $0x30] sm:$0xff]
    %v127 = vld [vmem:[%s2 + $0x38] sm:$0xff]
    %v128 = vld [vmem:[%s2 + $0x40] sm:$0xff]
    %v129 = vld [vmem:[%s2 + $0x48] sm:$0xff]
    %v130 = vld [vmem:[%s2 + $0x50] sm:$0xff]
    %v131 = vld [vmem:[%s2 + $0x58] sm:$0xff]
    %v132 = vld [vmem:[%s2 + $0x60] sm:$0xff]
    %v133 = vld [vmem:[%s2 + $0x68] sm:$0xff]
    %v134 = vld [vmem:[%s2 + $0x70] sm:$0xff]
    %v135 = vld [vmem:[%s2 + $0x78] sm:$0xff]
    %vm136 = vcmask 523264
    %v138 = vsel %vm136, 0.0, 0
    %140 = vmatpush.msra.mxu0 0.0
    %141 = vmatpush.msra.mxu0 0.0
    %142 = vmatpush.msra.mxu0 0.0
    %143 = vmatpush.msra.mxu0 0.0
    %144 = vmatpush.msra.mxu0 0.0
    %145 = vmatpush.msra.mxu0 0.0
    %146 = vmatpush.msra.mxu0 0.0
    %147 = vmatpush.msra.mxu0 0.0
    %148 = vmatpush.msra.mxu0 %v134
    %149 = vmatpush.msra.mxu0 %v132
    %150 = vmatpush.msra.mxu0 %v130
    %151 = vmatpush.msra.mxu0 %v128
    %152 = vmatpush.msra.mxu0 %v126
    %153 = vmatpush.msra.mxu0 %v124
    %154 = vmatpush.msra.mxu0 %v122
    %155 = vmatpush.msra.mxu0 %v120
    %156 = vmatmul.f32.gmra.mxu0 %v138
    %v157 = vpop.f32.mrf.mxu0
    %v158 = vadd.f32 0.0, %v157
    %159 = vdwg.mxu0
    %160 = vmatpush.msra.mxu0 0.0
    %161 = vmatpush.msra.mxu0 0.0
    %162 = vmatpush.msra.mxu0 0.0
    %163 = vmatpush.msra.mxu0 0.0
    %164 = vmatpush.msra.mxu0 0.0
    %165 = vmatpush.msra.mxu0 0.0
    %166 = vmatpush.msra.mxu0 0.0
    %167 = vmatpush.msra.mxu0 0.0
    %168 = vmatpush.msra.mxu0 %v135
    %169 = vmatpush.msra.mxu0 %v133
    %170 = vmatpush.msra.mxu0 %v131
    %171 = vmatpush.msra.mxu0 %v129
    %172 = vmatpush.msra.mxu0 %v127
    %173 = vmatpush.msra.mxu0 %v125
    %174 = vmatpush.msra.mxu0 %v123
    %175 = vmatpush.msra.mxu0 %v121
    %176 = vmatmul.f32.gmra.mxu0 %v138
    %v177 = vpop.f32.mrf.mxu0
    %v178 = vadd.f32 0.0, %v177
    %179 = vdwg.mxu0
    %v180 = vadd.f32 %v92, %v158
    %v181 = vadd.f32 %v115, %v178
    %v182 = vxor.u32 %v180, 2147483648
    %v183 = vmul.f32 %v182, 1.442695
    %v184 = vpow.pop %v183
    %v185 = vadd.f32 %v184, 1.0
    %v186 = vrcp.pop %v185
    %v187 = vmul.f32 %v185, %v186
    %v188 = vsub.f32 1.0, %v187
    %v189 = vmul.f32 %v186, %v188
    %v190 = vadd.f32 %v186, %v189
    %vm191 = vweird.f32 %v185
    %vm192 = vweird.f32 %v186
    %vm193 = vmor %vm191, %vm192
    %v194 = vsel %vm193, %v186, %v190
    %v195 = vand.u32 2147483647, %v185
    %vm196 = vcmp.eq.f32.partialorder %v195, 8.507059e+37
    %v197 = vand.u32 %v185, 2147483648
    %v198 = vor.u32 1.1754944e-38, %v197
    %v199 = vsel %vm196, %v198, %v194
    %v200 = vmul.f32 1.0, %v199
    %v201 = vtanh.pop %v181
    %v202 = vxor.u32 %v181, 2147483648
    %v203 = vmul.f32 %v202, 1.442695
    %v204 = vpow.pop %v203
    %v205 = vadd.f32 %v204, 1.0
    %v206 = vrcp.pop %v205
    %v207 = vmul.f32 %v205, %v206
    %v208 = vsub.f32 1.0, %v207
    %v209 = vmul.f32 %v206, %v208
    %v210 = vadd.f32 %v206, %v209
    %vm211 = vweird.f32 %v205
    %vm212 = vweird.f32 %v206
    %vm213 = vmor %vm211, %vm212
    %v214 = vsel %vm213, %v206, %v210
    %v215 = vand.u32 2147483647, %v205
    %vm216 = vcmp.eq.f32.partialorder %v215, 8.507059e+37
    %v217 = vand.u32 %v205, 2147483648
    %v218 = vor.u32 1.1754944e-38, %v217
    %v219 = vsel %vm216, %v218, %v214
    %v220 = vmul.f32 1.0, %v219
    %v221 = vmul.f32 %v200, 0.0
    %v222 = vmul.f32 %v200, %v201
    %224 = vrot.lane.b32.xlu0 %v222, 64
    %v225 = vpop.permute.xlu0 %224
    %v227 = vadd.f32 %v221, %v225
    %v228 = vtanh.pop %v227
    %v229 = vmul.f32 %v220, %v228
    %231 = vrot.lane.b32.xlu0 %v229, 64
    %v232 = vpop.permute.xlu0 %231
    %vm234 = vcmask 254976
    %235 = vst.msk [vmem:[#allocation2] sm:$0x3] %vm234, %v232
    %236 = vrot.lane.b32.xlu0 %v229, 32
    %v237 = vpop.permute.xlu0 %236
    %239 = vst.msk [vmem:[#allocation3 + $0xe] sm:$0x3] %vm234, %v237
    %v240 = vsel %vm136, %v232, 0
    %242 = vmatpush.msra.mxu0 0.0
    %243 = vmatpush.msra.mxu0 0.0
    %244 = vmatpush.msra.mxu0 0.0
    %245 = vmatpush.msra.mxu0 0.0
    %246 = vmatpush.msra.mxu0 0.0
    %247 = vmatpush.msra.mxu0 0.0
    %248 = vmatpush.msra.mxu0 0.0
    %249 = vmatpush.msra.mxu0 0.0
    %250 = vmatpush.msra.mxu0 %v134
    %251 = vmatpush.msra.mxu0 %v132
    %252 = vmatpush.msra.mxu0 %v130
    %253 = vmatpush.msra.mxu0 %v128
    %254 = vmatpush.msra.mxu0 %v126
    %255 = vmatpush.msra.mxu0 %v124
    %256 = vmatpush.msra.mxu0 %v122
    %257 = vmatpush.msra.mxu0 %v120
    %258 = vmatmul.f32.gmra.mxu0 %v240
    %v259 = vpop.f32.mrf.mxu0
    %v260 = vadd.f32 0.0, %v259
    %261 = vdwg.mxu0
    %262 = vmatpush.msra.mxu0 0.0
    %263 = vmatpush.msra.mxu0 0.0
    %264 = vmatpush.msra.mxu0 0.0
    %265 = vmatpush.msra.mxu0 0.0
    %266 = vmatpush.msra.mxu0 0.0
    %267 = vmatpush.msra.mxu0 0.0
    %268 = vmatpush.msra.mxu0 0.0
    %269 = vmatpush.msra.mxu0 0.0
    %270 = vmatpush.msra.mxu0 %v135
    %271 = vmatpush.msra.mxu0 %v133
    %272 = vmatpush.msra.mxu0 %v131
    %273 = vmatpush.msra.mxu0 %v129
    %274 = vmatpush.msra.mxu0 %v127
    %275 = vmatpush.msra.mxu0 %v125
    %276 = vmatpush.msra.mxu0 %v123
    %277 = vmatpush.msra.mxu0 %v121
    %278 = vmatmul.f32.gmra.mxu0 %v240
    %v279 = vpop.f32.mrf.mxu0
    %v280 = vadd.f32 0.0, %v279
    %281 = vdwg.mxu0
    %v284 = vrot.slane %v260, 6
    %v285 = vrot.slane %v280, 6
    %v288 = vadd.f32 %v92, %v284
    %v289 = vadd.f32 %v115, %v285
    %v290 = vxor.u32 %v288, 2147483648
    %v291 = vmul.f32 %v290, 1.442695
    %v292 = vpow.pop %v291
    %v293 = vadd.f32 %v292, 1.0
    %v294 = vrcp.pop %v293
    %v295 = vmul.f32 %v293, %v294
    %v296 = vsub.f32 1.0, %v295
    %v297 = vmul.f32 %v294, %v296
    %v298 = vadd.f32 %v294, %v297
    %vm299 = vweird.f32 %v293
    %vm300 = vweird.f32 %v294
    %vm301 = vmor %vm299, %vm300
    %v302 = vsel %vm301, %v294, %v298
    %v303 = vand.u32 2147483647, %v293
    %vm304 = vcmp.eq.f32.partialorder %v303, 8.507059e+37
    %v305 = vand.u32 %v293, 2147483648
    %v306 = vor.u32 1.1754944e-38, %v305
    %v307 = vsel %vm304, %v306, %v302
    %v308 = vmul.f32 1.0, %v307
    %v309 = vtanh.pop %v289
    %v310 = vxor.u32 %v289, 2147483648
    %v311 = vmul.f32 %v310, 1.442695
    %v312 = vpow.pop %v311
    %v313 = vadd.f32 %v312, 1.0
    %v314 = vrcp.pop %v313
    %v315 = vmul.f32 %v313, %v314
    %v316 = vsub.f32 1.0, %v315
    %v317 = vmul.f32 %v314, %v316
    %v318 = vadd.f32 %v314, %v317
    %vm319 = vweird.f32 %v313
    %vm320 = vweird.f32 %v314
    %vm321 = vmor %vm319, %vm320
    %v322 = vsel %vm321, %v314, %v318
    %v323 = vand.u32 2147483647, %v313
    %vm324 = vcmp.eq.f32.partialorder %v323, 8.507059e+37
    %v325 = vand.u32 %v313, 2147483648
    %v326 = vor.u32 1.1754944e-38, %v325
    %v327 = vsel %vm324, %v326, %v322
    %v328 = vmul.f32 1.0, %v327
    %v330 = vrot.slane %v227, 6
    %v332 = vmul.f32 %v308, %v330
    %v333 = vmul.f32 %v308, %v309
    %335 = vrot.lane.b32.xlu0 %v333, 64
    %v336 = vpop.permute.xlu0 %335
    %v338 = vadd.f32 %v332, %v336
    %v339 = vtanh.pop %v338
    %v340 = vmul.f32 %v328, %v339
    %342 = vrot.lane.b32.xlu0 %v340, 64
    %v343 = vpop.permute.xlu0 %342
    %vm345 = vcmask 257026
    %346 = vst.msk [vmem:[#allocation2] sm:$0xc] %vm345, %v343
    %347 = vrot.lane.b32.xlu0 %v340, 32
    %v348 = vpop.permute.xlu0 %347
    %350 = vst.msk [vmem:[#allocation3 + $0xa] sm:$0xc] %vm345, %v348
    %v351 = vrot.slane %v340, 2
    %352 = vrot.lane.b32.xlu0 %v351, 64
    %v353 = vpop.permute.xlu0 %352
    %v354 = vsel %vm136, %v353, 0
    %356 = vmatpush.msra.mxu0 0.0
    %357 = vmatpush.msra.mxu0 0.0
    %358 = vmatpush.msra.mxu0 0.0
    %359 = vmatpush.msra.mxu0 0.0
    %360 = vmatpush.msra.mxu0 0.0
    %361 = vmatpush.msra.mxu0 0.0
    %362 = vmatpush.msra.mxu0 0.0
    %363 = vmatpush.msra.mxu0 0.0
    %364 = vmatpush.msra.mxu0 %v134
    %365 = vmatpush.msra.mxu0 %v132
    %366 = vmatpush.msra.mxu0 %v130
    %367 = vmatpush.msra.mxu0 %v128
    %368 = vmatpush.msra.mxu0 %v126
    %369 = vmatpush.msra.mxu0 %v124
    %370 = vmatpush.msra.mxu0 %v122
    %371 = vmatpush.msra.mxu0 %v120
    %372 = vmatmul.f32.gmra.mxu0 %v354
    %v373 = vpop.f32.mrf.mxu0
    %v374 = vadd.f32 0.0, %v373
    %375 = vdwg.mxu0
    %376 = vmatpush.msra.mxu0 0.0
    %377 = vmatpush.msra.mxu0 0.0
    %378 = vmatpush.msra.mxu0 0.0
    %379 = vmatpush.msra.mxu0 0.0
    %380 = vmatpush.msra.mxu0 0.0
    %381 = vmatpush.msra.mxu0 0.0
    %382 = vmatpush.msra.mxu0 0.0
    %383 = vmatpush.msra.mxu0 0.0
    %384 = vmatpush.msra.mxu0 %v135
    %385 = vmatpush.msra.mxu0 %v133
    %386 = vmatpush.msra.mxu0 %v131
    %387 = vmatpush.msra.mxu0 %v129
    %388 = vmatpush.msra.mxu0 %v127
    %389 = vmatpush.msra.mxu0 %v125
    %390 = vmatpush.msra.mxu0 %v123
    %391 = vmatpush.msra.mxu0 %v121
    %392 = vmatmul.f32.gmra.mxu0 %v354
    %v393 = vpop.f32.mrf.mxu0
    %v394 = vadd.f32 0.0, %v393
    %395 = vdwg.mxu0
    %v398 = vrot.slane %v374, 4
    %v399 = vrot.slane %v394, 4
    %v402 = vadd.f32 %v92, %v398
    %v403 = vadd.f32 %v115, %v399
    %v404 = vxor.u32 %v402, 2147483648
    %v405 = vmul.f32 %v404, 1.442695
    %v406 = vpow.pop %v405
    %v407 = vadd.f32 %v406, 1.0
    %v408 = vrcp.pop %v407
    %v409 = vmul.f32 %v407, %v408
    %v410 = vsub.f32 1.0, %v409
    %v411 = vmul.f32 %v408, %v410
    %v412 = vadd.f32 %v408, %v411
    %vm413 = vweird.f32 %v407
    %vm414 = vweird.f32 %v408
    %vm415 = vmor %vm413, %vm414
    %v416 = vsel %vm415, %v408, %v412
    %v417 = vand.u32 2147483647, %v407
    %vm418 = vcmp.eq.f32.partialorder %v417, 8.507059e+37
    %v419 = vand.u32 %v407, 2147483648
    %v420 = vor.u32 1.1754944e-38, %v419
    %v421 = vsel %vm418, %v420, %v416
    %v422 = vmul.f32 1.0, %v421
    %v423 = vtanh.pop %v403
    %v424 = vxor.u32 %v403, 2147483648
    %v425 = vmul.f32 %v424, 1.442695
    %v426 = vpow.pop %v425
    %v427 = vadd.f32 %v426, 1.0
    %v428 = vrcp.pop %v427
    %v429 = vmul.f32 %v427, %v428
    %v430 = vsub.f32 1.0, %v429
    %v431 = vmul.f32 %v428, %v430
    %v432 = vadd.f32 %v428, %v431
    %vm433 = vweird.f32 %v427
    %vm434 = vweird.f32 %v428
    %vm435 = vmor %vm433, %vm434
    %v436 = vsel %vm435, %v428, %v432
    %v437 = vand.u32 2147483647, %v427
    %vm438 = vcmp.eq.f32.partialorder %v437, 8.507059e+37
    %v439 = vand.u32 %v427, 2147483648
    %v440 = vor.u32 1.1754944e-38, %v439
    %v441 = vsel %vm438, %v440, %v436
    %v442 = vmul.f32 1.0, %v441
    %v444 = vrot.slane %v338, 6
    %v446 = vmul.f32 %v422, %v444
    %v447 = vmul.f32 %v422, %v423
    %449 = vrot.lane.b32.xlu0 %v447, 64
    %v450 = vpop.permute.xlu0 %449
    %v452 = vadd.f32 %v446, %v450
    %v453 = vtanh.pop %v452
    %v454 = vmul.f32 %v442, %v453
    %456 = vrot.lane.b32.xlu0 %v454, 64
    %v457 = vpop.permute.xlu0 %456
    %vm459 = vcmask 259076
    %460 = vst.msk [vmem:[#allocation2] sm:$0x30] %vm459, %v457
    %461 = vrot.lane.b32.xlu0 %v454, 32
    %v462 = vpop.permute.xlu0 %461
    %464 = vst.msk [vmem:[#allocation3 + $0x6] sm:$0x30] %vm459, %v462
    %v465 = vrot.slane %v454, 4
    %466 = vrot.lane.b32.xlu0 %v465, 64
    %v467 = vpop.permute.xlu0 %466
    %v468 = vsel %vm136, %v467, 0
    %470 = vmatpush.msra.mxu0 0.0
    %471 = vmatpush.msra.mxu0 0.0
    %472 = vmatpush.msra.mxu0 0.0
    %473 = vmatpush.msra.mxu0 0.0
    %474 = vmatpush.msra.mxu0 0.0
    %475 = vmatpush.msra.mxu0 0.0
    %476 = vmatpush.msra.mxu0 0.0
    %477 = vmatpush.msra.mxu0 0.0
    %478 = vmatpush.msra.mxu0 %v134
    %479 = vmatpush.msra.mxu0 %v132
    %480 = vmatpush.msra.mxu0 %v130
    %481 = vmatpush.msra.mxu0 %v128
    %482 = vmatpush.msra.mxu0 %v126
    %483 = vmatpush.msra.mxu0 %v124
    %484 = vmatpush.msra.mxu0 %v122
    %485 = vmatpush.msra.mxu0 %v120
    %486 = vmatmul.f32.gmra.mxu0 %v468
    %v487 = vpop.f32.mrf.mxu0
    %v488 = vadd.f32 0.0, %v487
    %489 = vdwg.mxu0
    %490 = vmatpush.msra.mxu0 0.0
    %491 = vmatpush.msra.mxu0 0.0
    %492 = vmatpush.msra.mxu0 0.0
    %493 = vmatpush.msra.mxu0 0.0
    %494 = vmatpush.msra.mxu0 0.0
    %495 = vmatpush.msra.mxu0 0.0
    %496 = vmatpush.msra.mxu0 0.0
    %497 = vmatpush.msra.mxu0 0.0
    %498 = vmatpush.msra.mxu0 %v135
    %499 = vmatpush.msra.mxu0 %v133
    %500 = vmatpush.msra.mxu0 %v131
    %501 = vmatpush.msra.mxu0 %v129
    %502 = vmatpush.msra.mxu0 %v127
    %503 = vmatpush.msra.mxu0 %v125
    %504 = vmatpush.msra.mxu0 %v123
    %505 = vmatpush.msra.mxu0 %v121
    %506 = vmatmul.f32.gmra.mxu0 %v468
    %v507 = vpop.f32.mrf.mxu0
    %v508 = vadd.f32 0.0, %v507
    %509 = vdwg.mxu0
    %v512 = vrot.slane %v488, 2
    %v513 = vrot.slane %v508, 2
    %v516 = vadd.f32 %v92, %v512
    %v517 = vadd.f32 %v115, %v513
    %v518 = vxor.u32 %v516, 2147483648
    %v519 = vmul.f32 %v518, 1.442695
    %v520 = vpow.pop %v519
    %v521 = vadd.f32 %v520, 1.0
    %v522 = vrcp.pop %v521
    %v523 = vmul.f32 %v521, %v522
    %v524 = vsub.f32 1.0, %v523
    %v525 = vmul.f32 %v522, %v524
    %v526 = vadd.f32 %v522, %v525
    %vm527 = vweird.f32 %v521
    %vm528 = vweird.f32 %v522
    %vm529 = vmor %vm527, %vm528
    %v530 = vsel %vm529, %v522, %v526
    %v531 = vand.u32 2147483647, %v521
    %vm532 = vcmp.eq.f32.partialorder %v531, 8.507059e+37
    %v533 = vand.u32 %v521, 2147483648
    %v534 = vor.u32 1.1754944e-38, %v533
    %v535 = vsel %vm532, %v534, %v530
    %v536 = vmul.f32 1.0, %v535
    %v537 = vtanh.pop %v517
    %v538 = vxor.u32 %v517, 2147483648
    %v539 = vmul.f32 %v538, 1.442695
    %v540 = vpow.pop %v539
    %v541 = vadd.f32 %v540, 1.0
    %v542 = vrcp.pop %v541
    %v543 = vmul.f32 %v541, %v542
    %v544 = vsub.f32 1.0, %v543
    %v545 = vmul.f32 %v542, %v544
    %v546 = vadd.f32 %v542, %v545
    %vm547 = vweird.f32 %v541
    %vm548 = vweird.f32 %v542
    %vm549 = vmor %vm547, %vm548
    %v550 = vsel %vm549, %v542, %v546
    %v551 = vand.u32 2147483647, %v541
    %vm552 = vcmp.eq.f32.partialorder %v551, 8.507059e+37
    %v553 = vand.u32 %v541, 2147483648
    %v554 = vor.u32 1.1754944e-38, %v553
    %v555 = vsel %vm552, %v554, %v550
    %v556 = vmul.f32 1.0, %v555
    %v558 = vrot.slane %v452, 6
    %v560 = vmul.f32 %v536, %v558
    %v561 = vmul.f32 %v536, %v537
    %563 = vrot.lane.b32.xlu0 %v561, 64
    %v564 = vpop.permute.xlu0 %563
    %v566 = vadd.f32 %v560, %v564
    %v567 = vtanh.pop %v566
    %v568 = vmul.f32 %v556, %v567
    %570 = vrot.lane.b32.xlu0 %v568, 64
    %v571 = vpop.permute.xlu0 %570
    %vm573 = vcmask 261126
    %574 = vst.msk [vmem:[#allocation2] sm:$0xc0] %vm573, %v571
    %575 = vrot.lane.b32.xlu0 %v568, 32
    %v576 = vpop.permute.xlu0 %575
    %578 = vst.msk [vmem:[#allocation3 + $0x2] sm:$0xc0] %vm573, %v576
    %v579 = vrot.slane %v568, 6
    %580 = vrot.lane.b32.xlu0 %v579, 64
    %v581 = vpop.permute.xlu0 %580
    %v582 = vsel %vm136, %v581, 0
    %584 = vmatpush.msra.mxu0 0.0
    %585 = vmatpush.msra.mxu0 0.0
    %586 = vmatpush.msra.mxu0 0.0
    %587 = vmatpush.msra.mxu0 0.0
    %588 = vmatpush.msra.mxu0 0.0
    %589 = vmatpush.msra.mxu0 0.0
    %590 = vmatpush.msra.mxu0 0.0
    %591 = vmatpush.msra.mxu0 0.0
    %592 = vmatpush.msra.mxu0 %v134
    %593 = vmatpush.msra.mxu0 %v132
    %594 = vmatpush.msra.mxu0 %v130
    %595 = vmatpush.msra.mxu0 %v128
    %596 = vmatpush.msra.mxu0 %v126
    %597 = vmatpush.msra.mxu0 %v124
    %598 = vmatpush.msra.mxu0 %v122
    %599 = vmatpush.msra.mxu0 %v120
    %600 = vmatmul.f32.gmra.mxu0 %v582
    %v601 = vpop.f32.mrf.mxu0
    %v602 = vadd.f32 0.0, %v601
    %603 = vdwg.mxu0
    %604 = vmatpush.msra.mxu0 0.0
    %605 = vmatpush.msra.mxu0 0.0
    %606 = vmatpush.msra.mxu0 0.0
    %607 = vmatpush.msra.mxu0 0.0
    %608 = vmatpush.msra.mxu0 0.0
    %609 = vmatpush.msra.mxu0 0.0
    %610 = vmatpush.msra.mxu0 0.0
    %611 = vmatpush.msra.mxu0 0.0
    %612 = vmatpush.msra.mxu0 %v135
    %613 = vmatpush.msra.mxu0 %v133
    %614 = vmatpush.msra.mxu0 %v131
    %615 = vmatpush.msra.mxu0 %v129
    %616 = vmatpush.msra.mxu0 %v127
    %617 = vmatpush.msra.mxu0 %v125
    %618 = vmatpush.msra.mxu0 %v123
    %619 = vmatpush.msra.mxu0 %v121
    %620 = vmatmul.f32.gmra.mxu0 %v582
    %v621 = vpop.f32.mrf.mxu0
    %v622 = vadd.f32 0.0, %v621
    %623 = vdwg.mxu0
    %v624 = vadd.f32 %v95, %v602
    %v625 = vadd.f32 %v118, %v622
    %v626 = vxor.u32 %v624, 2147483648
    %v627 = vmul.f32 %v626, 1.442695
    %v628 = vpow.pop %v627
    %v629 = vadd.f32 %v628, 1.0
    %v630 = vrcp.pop %v629
    %v631 = vmul.f32 %v629, %v630
    %v632 = vsub.f32 1.0, %v631
    %v633 = vmul.f32 %v630, %v632
    %v634 = vadd.f32 %v630, %v633
    %vm635 = vweird.f32 %v629
    %vm636 = vweird.f32 %v630
    %vm637 = vmor %vm635, %vm636
    %v638 = vsel %vm637, %v630, %v634
    %v639 = vand.u32 2147483647, %v629
    %vm640 = vcmp.eq.f32.partialorder %v639, 8.507059e+37
    %v641 = vand.u32 %v629, 2147483648
    %v642 = vor.u32 1.1754944e-38, %v641
    %v643 = vsel %vm640, %v642, %v638
    %v644 = vmul.f32 1.0, %v643
    %v645 = vtanh.pop %v625
    %v646 = vxor.u32 %v625, 2147483648
    %v647 = vmul.f32 %v646, 1.442695
    %v648 = vpow.pop %v647
    %v649 = vadd.f32 %v648, 1.0
    %v650 = vrcp.pop %v649
    %v651 = vmul.f32 %v649, %v650
    %v652 = vsub.f32 1.0, %v651
    %v653 = vmul.f32 %v650, %v652
    %v654 = vadd.f32 %v650, %v653
    %vm655 = vweird.f32 %v649
    %vm656 = vweird.f32 %v650
    %vm657 = vmor %vm655, %vm656
    %v658 = vsel %vm657, %v650, %v654
    %v659 = vand.u32 2147483647, %v649
    %vm660 = vcmp.eq.f32.partialorder %v659, 8.507059e+37
    %v661 = vand.u32 %v649, 2147483648
    %v662 = vor.u32 1.1754944e-38, %v661
    %v663 = vsel %vm660, %v662, %v658
    %v664 = vmul.f32 1.0, %v663
    %v666 = vrot.slane %v566, 6
    %v668 = vmul.f32 %v644, %v666
    %v669 = vmul.f32 %v644, %v645
    %671 = vrot.lane.b32.xlu0 %v669, 64
    %v672 = vpop.permute.xlu0 %671
    %v674 = vadd.f32 %v668, %v672
    %v675 = vtanh.pop %v674
    %v676 = vmul.f32 %v664, %v675
    %678 = vrot.lane.b32.xlu0 %v676, 64
    %v679 = vpop.permute.xlu0 %678
    %681 = vst.msk [vmem:[#allocation2 + $0x8] sm:$0x3] %vm234, %v679
    %682 = vrot.lane.b32.xlu0 %v676, 32
    %v683 = vpop.permute.xlu0 %682
    %685 = vst.msk [vmem:[#allocation3 + $0x6] sm:$0x3] %vm234, %v683
    %v686 = vsel %vm136, %v679, 0
    %688 = vmatpush.msra.mxu0 0.0
    %689 = vmatpush.msra.mxu0 0.0
    %690 = vmatpush.msra.mxu0 0.0
    %691 = vmatpush.msra.mxu0 0.0
    %692 = vmatpush.msra.mxu0 0.0
    %693 = vmatpush.msra.mxu0 0.0
    %694 = vmatpush.msra.mxu0 0.0
    %695 = vmatpush.msra.mxu0 0.0
    %696 = vmatpush.msra.mxu0 %v134
    %697 = vmatpush.msra.mxu0 %v132
    %698 = vmatpush.msra.mxu0 %v130
    %699 = vmatpush.msra.mxu0 %v128
    %700 = vmatpush.msra.mxu0 %v126
    %701 = vmatpush.msra.mxu0 %v124
    %702 = vmatpush.msra.mxu0 %v122
    %703 = vmatpush.msra.mxu0 %v120
    %704 = vmatmul.f32.gmra.mxu0 %v686
    %v705 = vpop.f32.mrf.mxu0
    %v706 = vadd.f32 0.0, %v705
    %707 = vdwg.mxu0
    %708 = vmatpush.msra.mxu0 0.0
    %709 = vmatpush.msra.mxu0 0.0
    %710 = vmatpush.msra.mxu0 0.0
    %711 = vmatpush.msra.mxu0 0.0
    %712 = vmatpush.msra.mxu0 0.0
    %713 = vmatpush.msra.mxu0 0.0
    %714 = vmatpush.msra.mxu0 0.0
    %715 = vmatpush.msra.mxu0 0.0
    %716 = vmatpush.msra.mxu0 %v135
    %717 = vmatpush.msra.mxu0 %v133
    %718 = vmatpush.msra.mxu0 %v131
    %719 = vmatpush.msra.mxu0 %v129
    %720 = vmatpush.msra.mxu0 %v127
    %721 = vmatpush.msra.mxu0 %v125
    %722 = vmatpush.msra.mxu0 %v123
    %723 = vmatpush.msra.mxu0 %v121
    %724 = vmatmul.f32.gmra.mxu0 %v686
    %v725 = vpop.f32.mrf.mxu0
    %v726 = vadd.f32 0.0, %v725
    %727 = vdwg.mxu0
    %v730 = vrot.slane %v706, 6
    %v731 = vrot.slane %v726, 6
    %v734 = vadd.f32 %v95, %v730
    %v735 = vadd.f32 %v118, %v731
    %v736 = vxor.u32 %v734, 2147483648
    %v737 = vmul.f32 %v736, 1.442695
    %v738 = vpow.pop %v737
    %v739 = vadd.f32 %v738, 1.0
    %v740 = vrcp.pop %v739
    %v741 = vmul.f32 %v739, %v740
    %v742 = vsub.f32 1.0, %v741
    %v743 = vmul.f32 %v740, %v742
    %v744 = vadd.f32 %v740, %v743
    %vm745 = vweird.f32 %v739
    %vm746 = vweird.f32 %v740
    %vm747 = vmor %vm745, %vm746
    %v748 = vsel %vm747, %v740, %v744
    %v749 = vand.u32 2147483647, %v739
    %vm750 = vcmp.eq.f32.partialorder %v749, 8.507059e+37
    %v751 = vand.u32 %v739, 2147483648
    %v752 = vor.u32 1.1754944e-38, %v751
    %v753 = vsel %vm750, %v752, %v748
    %v754 = vmul.f32 1.0, %v753
    %v755 = vtanh.pop %v735
    %v756 = vxor.u32 %v735, 2147483648
    %v757 = vmul.f32 %v756, 1.442695
    %v758 = vpow.pop %v757
    %v759 = vadd.f32 %v758, 1.0
    %v760 = vrcp.pop %v759
    %v761 = vmul.f32 %v759, %v760
    %v762 = vsub.f32 1.0, %v761
    %v763 = vmul.f32 %v760, %v762
    %v764 = vadd.f32 %v760, %v763
    %vm765 = vweird.f32 %v759
    %vm766 = vweird.f32 %v760
    %vm767 = vmor %vm765, %vm766
    %v768 = vsel %vm767, %v760, %v764
    %v769 = vand.u32 2147483647, %v759
    %vm770 = vcmp.eq.f32.partialorder %v769, 8.507059e+37
    %v771 = vand.u32 %v759, 2147483648
    %v772 = vor.u32 1.1754944e-38, %v771
    %v773 = vsel %vm770, %v772, %v768
    %v774 = vmul.f32 1.0, %v773
    %v776 = vrot.slane %v674, 6
    %v778 = vmul.f32 %v754, %v776
    %v779 = vmul.f32 %v754, %v755
    %781 = vrot.lane.b32.xlu0 %v779, 64
    %v782 = vpop.permute.xlu0 %781
    %v784 = vadd.f32 %v778, %v782
    %v785 = vtanh.pop %v784
    %v786 = vmul.f32 %v774, %v785
    %788 = vrot.lane.b32.xlu0 %v786, 64
    %v789 = vpop.permute.xlu0 %788
    %791 = vst.msk [vmem:[#allocation2 + $0x8] sm:$0xc] %vm345, %v789
    %792 = vrot.lane.b32.xlu0 %v786, 32
    %v793 = vpop.permute.xlu0 %792
    %795 = vst.msk [vmem:[#allocation3 + $0x2] sm:$0xc] %vm345, %v793
    %v796 = vrot.slane %v786, 2
    %797 = vrot.lane.b32.xlu0 %v796, 64
    %v798 = vpop.permute.xlu0 %797
    %v799 = vsel %vm136, %v798, 0
    %801 = vmatpush.msra.mxu0 0.0
    %802 = vmatpush.msra.mxu0 0.0
    %803 = vmatpush.msra.mxu0 0.0
    %804 = vmatpush.msra.mxu0 0.0
    %805 = vmatpush.msra.mxu0 0.0
    %806 = vmatpush.msra.mxu0 0.0
    %807 = vmatpush.msra.mxu0 0.0
    %808 = vmatpush.msra.mxu0 0.0
    %809 = vmatpush.msra.mxu0 %v134
    %810 = vmatpush.msra.mxu0 %v132
    %811 = vmatpush.msra.mxu0 %v130
    %812 = vmatpush.msra.mxu0 %v128
    %813 = vmatpush.msra.mxu0 %v126
    %814 = vmatpush.msra.mxu0 %v124
    %815 = vmatpush.msra.mxu0 %v122
    %816 = vmatpush.msra.mxu0 %v120
    %817 = vmatmul.f32.gmra.mxu0 %v799
    %v818 = vpop.f32.mrf.mxu0
    %v819 = vadd.f32 0.0, %v818
    %820 = vdwg.mxu0
    %821 = vmatpush.msra.mxu0 0.0
    %822 = vmatpush.msra.mxu0 0.0
    %823 = vmatpush.msra.mxu0 0.0
    %824 = vmatpush.msra.mxu0 0.0
    %825 = vmatpush.msra.mxu0 0.0
    %826 = vmatpush.msra.mxu0 0.0
    %827 = vmatpush.msra.mxu0 0.0
    %828 = vmatpush.msra.mxu0 0.0
    %829 = vmatpush.msra.mxu0 %v135
    %830 = vmatpush.msra.mxu0 %v133
    %831 = vmatpush.msra.mxu0 %v131
    %832 = vmatpush.msra.mxu0 %v129
    %833 = vmatpush.msra.mxu0 %v127
    %834 = vmatpush.msra.mxu0 %v125
    %835 = vmatpush.msra.mxu0 %v123
    %836 = vmatpush.msra.mxu0 %v121
    %837 = vmatmul.f32.gmra.mxu0 %v799
    %v838 = vpop.f32.mrf.mxu0
    %v839 = vadd.f32 0.0, %v838
    %840 = vdwg.mxu0
    %v843 = vrot.slane %v819, 4
    %v844 = vrot.slane %v839, 4
    %v847 = vadd.f32 %v95, %v843
    %v848 = vadd.f32 %v118, %v844
    %v849 = vxor.u32 %v847, 2147483648
    %v850 = vmul.f32 %v849, 1.442695
    %v851 = vpow.pop %v850
    %v852 = vadd.f32 %v851, 1.0
    %v853 = vrcp.pop %v852
    %v854 = vmul.f32 %v852, %v853
    %v855 = vsub.f32 1.0, %v854
    %v856 = vmul.f32 %v853, %v855
    %v857 = vadd.f32 %v853, %v856
    %vm858 = vweird.f32 %v852
    %vm859 = vweird.f32 %v853
    %vm860 = vmor %vm858, %vm859
    %v861 = vsel %vm860, %v853, %v857
    %v862 = vand.u32 2147483647, %v852
    %vm863 = vcmp.eq.f32.partialorder %v862, 8.507059e+37
    %v864 = vand.u32 %v852, 2147483648
    %v865 = vor.u32 1.1754944e-38, %v864
    %v866 = vsel %vm863, %v865, %v861
    %v867 = vmul.f32 1.0, %v866
    %v868 = vtanh.pop %v848
    %v869 = vxor.u32 %v848, 2147483648
    %v870 = vmul.f32 %v869, 1.442695
    %v871 = vpow.pop %v870
    %v872 = vadd.f32 %v871, 1.0
    %v873 = vrcp.pop %v872
    %v874 = vmul.f32 %v872, %v873
    %v875 = vsub.f32 1.0, %v874
    %v876 = vmul.f32 %v873, %v875
    %v877 = vadd.f32 %v873, %v876
    %vm878 = vweird.f32 %v872
    %vm879 = vweird.f32 %v873
    %vm880 = vmor %vm878, %vm879
    %v881 = vsel %vm880, %v873, %v877
    %v882 = vand.u32 2147483647, %v872
    %vm883 = vcmp.eq.f32.partialorder %v882, 8.507059e+37
    %v884 = vand.u32 %v872, 2147483648
    %v885 = vor.u32 1.1754944e-38, %v884
    %v886 = vsel %vm883, %v885, %v881
    %v887 = vmul.f32 1.0, %v886
    %v889 = vrot.slane %v784, 6
    %v891 = vmul.f32 %v867, %v889
    %v892 = vmul.f32 %v867, %v868
    %894 = vrot.lane.b32.xlu0 %v892, 64
    %v895 = vpop.permute.xlu0 %894
    %v897 = vadd.f32 %v891, %v895
    %v898 = vtanh.pop %v897
    %v899 = vmul.f32 %v887, %v898
    %901 = vrot.lane.b32.xlu0 %v899, 64
    %v902 = vpop.permute.xlu0 %901
    %904 = vst.msk [vmem:[#allocation2 + $0x8] sm:$0x30] %vm459, %v902
    %905 = vrot.lane.b32.xlu0 %v899, 32
    %v906 = vpop.permute.xlu0 %905
    %908 = vst.msk [vmem:[#allocation3 - $0x2] sm:$0x30] %vm459, %v906
    %v909 = vrot.slane %v899, 4
    %910 = vrot.lane.b32.xlu0 %v909, 64
    %v911 = vpop.permute.xlu0 %910
    %v912 = vsel %vm136, %v911, 0
    %914 = vmatpush.msra.mxu0 0.0
    %915 = vmatpush.msra.mxu0 0.0
    %916 = vmatpush.msra.mxu0 0.0
    %917 = vmatpush.msra.mxu0 0.0
    %918 = vmatpush.msra.mxu0 0.0
    %919 = vmatpush.msra.mxu0 0.0
    %920 = vmatpush.msra.mxu0 0.0
    %921 = vmatpush.msra.mxu0 0.0
    %922 = vmatpush.msra.mxu0 %v134
    %923 = vmatpush.msra.mxu0 %v132
    %924 = vmatpush.msra.mxu0 %v130
    %925 = vmatpush.msra.mxu0 %v128
    %926 = vmatpush.msra.mxu0 %v126
    %927 = vmatpush.msra.mxu0 %v124
    %928 = vmatpush.msra.mxu0 %v122
    %929 = vmatpush.msra.mxu0 %v120
    %930 = vmatmul.f32.gmra.mxu0 %v912
    %v931 = vpop.f32.mrf.mxu0
    %v932 = vadd.f32 0.0, %v931
    %933 = vdwg.mxu0
    %934 = vmatpush.msra.mxu0 0.0
    %935 = vmatpush.msra.mxu0 0.0
    %936 = vmatpush.msra.mxu0 0.0
    %937 = vmatpush.msra.mxu0 0.0
    %938 = vmatpush.msra.mxu0 0.0
    %939 = vmatpush.msra.mxu0 0.0
    %940 = vmatpush.msra.mxu0 0.0
    %941 = vmatpush.msra.mxu0 0.0
    %942 = vmatpush.msra.mxu0 %v135
    %943 = vmatpush.msra.mxu0 %v133
    %944 = vmatpush.msra.mxu0 %v131
    %945 = vmatpush.msra.mxu0 %v129
    %946 = vmatpush.msra.mxu0 %v127
    %947 = vmatpush.msra.mxu0 %v125
    %948 = vmatpush.msra.mxu0 %v123
    %949 = vmatpush.msra.mxu0 %v121
    %950 = vmatmul.f32.gmra.mxu0 %v912
    %v951 = vpop.f32.mrf.mxu0
    %v952 = vadd.f32 0.0, %v951
    %953 = vdwg.mxu0
    %v956 = vrot.slane %v932, 2
    %v957 = vrot.slane %v952, 2
    %v960 = vadd.f32 %v95, %v956
    %v961 = vadd.f32 %v118, %v957
    %v962 = vxor.u32 %v960, 2147483648
    %v963 = vmul.f32 %v962, 1.442695
    %v964 = vpow.pop %v963
    %v965 = vadd.f32 %v964, 1.0
    %v966 = vrcp.pop %v965
    %v967 = vmul.f32 %v965, %v966
    %v968 = vsub.f32 1.0, %v967
    %v969 = vmul.f32 %v966, %v968
    %v970 = vadd.f32 %v966, %v969
    %vm971 = vweird.f32 %v965
    %vm972 = vweird.f32 %v966
    %vm973 = vmor %vm971, %vm972
    %v974 = vsel %vm973, %v966, %v970
    %v975 = vand.u32 2147483647, %v965
    %vm976 = vcmp.eq.f32.partialorder %v975, 8.507059e+37
    %v977 = vand.u32 %v965, 2147483648
    %v978 = vor.u32 1.1754944e-38, %v977
    %v979 = vsel %vm976, %v978, %v974
    %v980 = vmul.f32 1.0, %v979
    %v981 = vtanh.pop %v961
    %v982 = vxor.u32 %v961, 2147483648
    %v983 = vmul.f32 %v982, 1.442695
    %v984 = vpow.pop %v983
    %v985 = vadd.f32 %v984, 1.0
    %v986 = vrcp.pop %v985
    %v987 = vmul.f32 %v985, %v986
    %v988 = vsub.f32 1.0, %v987
    %v989 = vmul.f32 %v986, %v988
    %v990 = vadd.f32 %v986, %v989
    %vm991 = vweird.f32 %v985
    %vm992 = vweird.f32 %v986
    %vm993 = vmor %vm991, %vm992
    %v994 = vsel %vm993, %v986, %v990
    %v995 = vand.u32 2147483647, %v985
    %vm996 = vcmp.eq.f32.partialorder %v995, 8.507059e+37
    %v997 = vand.u32 %v985, 2147483648
    %v998 = vor.u32 1.1754944e-38, %v997
    %v999 = vsel %vm996, %v998, %v994
    %v1000 = vmul.f32 1.0, %v999
    %v1002 = vrot.slane %v897, 6
    %v1004 = vmul.f32 %v980, %v1002
    %v1005 = vmul.f32 %v980, %v981
    %1007 = vrot.lane.b32.xlu0 %v1005, 64
    %v1008 = vpop.permute.xlu0 %1007
    %v1010 = vadd.f32 %v1004, %v1008
    %v1011 = vtanh.pop %v1010
    %v1012 = vmul.f32 %v1000, %v1011
    %1014 = vrot.lane.b32.xlu0 %v1012, 64
    %v1015 = vpop.permute.xlu0 %1014
    %1017 = vst.msk [vmem:[#allocation2 + $0x8] sm:$0xc0] %vm573, %v1015
    %1018 = vrot.lane.b32.xlu0 %v1012, 32
    %v1019 = vpop.permute.xlu0 %1018
    %1021 = vst.msk [vmem:[#allocation3 - $0x6] sm:$0xc0] %vm573, %v1019
    %v1022 = vld [vmem:[#allocation2] sm:$0xff]
    %v1023 = vld [vmem:[#allocation2 + $0x8] sm:$0xff]
    %v1024 = vld [vmem:[#allocation3] sm:$0xff]
    %v1025 = vld [vmem:[#allocation3 + $0x8] sm:$0xff]
    %v1026 = vld [vmem:[%s4] sm:$0xff]
    %v1027 = vld [vmem:[%s4 + $0x8] sm:$0xff]
    %v1028 = vld [vmem:[%s4 + $0x10] sm:$0xff]
    %v1029 = vld [vmem:[%s4 + $0x18] sm:$0xff]
    %v1030 = vld [vmem:[%s5] sm:$0xff]
    %v1031 = vld [vmem:[%s5 + $0x8] sm:$0xff]
    %v1032 = vld [vmem:[%s5 + $0x10] sm:$0xff]
    %v1033 = vld [vmem:[%s5 + $0x18] sm:$0xff]
    %vm1034 = vcmask 261120
    %v1036 = vsel %vm1034, %v1024, 0
    %v1039 = vsel %vm1034, %v1025, 0
    %1041 = vmatpush.msra.mxu0 0.0
    %1042 = vmatpush.msra.mxu0 0.0
    %1043 = vmatpush.msra.mxu0 0.0
    %1044 = vmatpush.msra.mxu0 0.0
    %1045 = vmatpush.msra.mxu0 0.0
    %1046 = vmatpush.msra.mxu0 0.0
    %1047 = vmatpush.msra.mxu0 0.0
    %1048 = vmatpush.msra.mxu0 0.0
    %1049 = vmatpush.msra.mxu0 0.0
    %1050 = vmatpush.msra.mxu0 0.0
    %1051 = vmatpush.msra.mxu0 0.0
    %1052 = vmatpush.msra.mxu0 0.0
    %1053 = vmatpush.msra.mxu0 %v1033
    %1054 = vmatpush.msra.mxu0 %v1032
    %1055 = vmatpush.msra.mxu0 %v1031
    %1056 = vmatpush.msra.mxu0 %v1030
    %1057 = vmatmul.f32.gmra.mxu0 %v1036
    %v1058 = vpop.f32.mrf.mxu0
    %v1059 = vadd.f32 0.0, %v1058
    %1060 = vmatmul.f32.gmra.mxu0 %v1039
    %v1061 = vpop.f32.mrf.mxu0
    %v1062 = vadd.f32 0.0, %v1061
    %1063 = vdwg.mxu0
    %v1065 = vsel %vm1034, %v1022, 0
    %v1068 = vsel %vm1034, %v1023, 0
    %1070 = vmatpush.msra.mxu0 0.0
    %1071 = vmatpush.msra.mxu0 0.0
    %1072 = vmatpush.msra.mxu0 0.0
    %1073 = vmatpush.msra.mxu0 0.0
    %1074 = vmatpush.msra.mxu0 0.0
    %1075 = vmatpush.msra.mxu0 0.0
    %1076 = vmatpush.msra.mxu0 0.0
    %1077 = vmatpush.msra.mxu0 0.0
    %1078 = vmatpush.msra.mxu0 0.0
    %1079 = vmatpush.msra.mxu0 0.0
    %1080 = vmatpush.msra.mxu0 0.0
    %1081 = vmatpush.msra.mxu0 0.0
    %1082 = vmatpush.msra.mxu0 %v1029
    %1083 = vmatpush.msra.mxu0 %v1028
    %1084 = vmatpush.msra.mxu0 %v1027
    %1085 = vmatpush.msra.mxu0 %v1026
    %1086 = vmatmul.f32.gmra.mxu0 %v1065
    %v1087 = vpop.f32.mrf.mxu0
    %v1088 = vadd.f32 %v1059, %v1087
    %1089 = vmatmul.f32.gmra.mxu0 %v1068
    %v1090 = vpop.f32.mrf.mxu0
    %v1091 = vadd.f32 %v1062, %v1090
    %1092 = vdwg.mxu0
    %v1093 = vld [vmem:[%s7] sm:$0x1]
    %v1095 = vperm.slane %v1093, 0
    %v1097 = vadd.f32 %v1088, %v1095
    %v1098 = vadd.f32 %v1091, %v1095
    %v1099 = vld [vmem:[%s6] sm:$0xff]
    %v1100 = vld [vmem:[%s6 + $0x8] sm:$0xff]
    %v1101 = vld [vmem:[%s6 + $0x10] sm:$0xff]
    %v1102 = vld [vmem:[%s6 + $0x18] sm:$0xff]
    %v1103 = vsel %vm1034, 0.0, 0
    %1105 = vmatpush.msra.mxu0 0.0
    %1106 = vmatpush.msra.mxu0 0.0
    %1107 = vmatpush.msra.mxu0 0.0
    %1108 = vmatpush.msra.mxu0 0.0
    %1109 = vmatpush.msra.mxu0 0.0
    %1110 = vmatpush.msra.mxu0 0.0
    %1111 = vmatpush.msra.mxu0 0.0
    %1112 = vmatpush.msra.mxu0 0.0
    %1113 = vmatpush.msra.mxu0 0.0
    %1114 = vmatpush.msra.mxu0 0.0
    %1115 = vmatpush.msra.mxu0 0.0
    %1116 = vmatpush.msra.mxu0 0.0
    %1117 = vmatpush.msra.mxu0 %v1102
    %1118 = vmatpush.msra.mxu0 %v1101
    %1119 = vmatpush.msra.mxu0 %v1100
    %1120 = vmatpush.msra.mxu0 %v1099
    %1121 = vmatmul.f32.gmra.mxu0 %v1103
    %v1122 = vpop.f32.mrf.mxu0
    %v1123 = vadd.f32 0.0, %v1122
    %1124 = vdwg.mxu0
    %v1125 = vadd.f32 %v1097, %v1123
    %v1126 = vxor.u32 %v1125, 2147483648
    %v1127 = vmul.f32 %v1126, 1.442695
    %v1128 = vpow.pop %v1127
    %v1129 = vadd.f32 %v1128, 1.0
    %v1130 = vrcp.pop %v1129
    %v1131 = vmul.f32 %v1129, %v1130
    %v1132 = vsub.f32 1.0, %v1131
    %v1133 = vmul.f32 %v1130, %v1132
    %v1134 = vadd.f32 %v1130, %v1133
    %vm1135 = vweird.f32 %v1129
    %vm1136 = vweird.f32 %v1130
    %vm1137 = vmor %vm1135, %vm1136
    %v1138 = vsel %vm1137, %v1130, %v1134
    %v1139 = vand.u32 2147483647, %v1129
    %vm1140 = vcmp.eq.f32.partialorder %v1139, 8.507059e+37
    %v1141 = vand.u32 %v1129, 2147483648
    %v1142 = vor.u32 1.1754944e-38, %v1141
    %v1143 = vsel %vm1140, %v1142, %v1138
    %v1144 = vmul.f32 1.0, %v1143
    %v1145 = vtanh.pop %v1125
    %v1146 = vmul.f32 %v1144, 0.0
    %1148 = vrot.lane.b32.xlu0 %v1145, 64
    %v1149 = vpop.permute.xlu0 %1148
    %v1151 = vmul.f32 %v1144, %v1149
    %1153 = vrot.lane.b32.xlu0 %v1151, 32
    %v1154 = vpop.permute.xlu0 %1153
    %v1156 = vadd.f32 %v1146, %v1154
    %v1157 = vtanh.pop %v1156
    %1159 = vrot.lane.b32.xlu0 %v1157, 64
    %v1160 = vpop.permute.xlu0 %1159
    %v1162 = vmul.f32 %v1144, %v1160
    %1164 = vrot.lane.b32.xlu0 %v1162, 32
    %v1165 = vpop.permute.xlu0 %1164
    %v1166 = vsel %vm1034, %v1165, 0
    %1168 = vmatpush.msra.mxu0 0.0
    %1169 = vmatpush.msra.mxu0 0.0
    %1170 = vmatpush.msra.mxu0 0.0
    %1171 = vmatpush.msra.mxu0 0.0
    %1172 = vmatpush.msra.mxu0 0.0
    %1173 = vmatpush.msra.mxu0 0.0
    %1174 = vmatpush.msra.mxu0 0.0
    %1175 = vmatpush.msra.mxu0 0.0
    %1176 = vmatpush.msra.mxu0 0.0
    %1177 = vmatpush.msra.mxu0 0.0
    %1178 = vmatpush.msra.mxu0 0.0
    %1179 = vmatpush.msra.mxu0 0.0
    %1180 = vmatpush.msra.mxu0 %v1102
    %1181 = vmatpush.msra.mxu0 %v1101
    %1182 = vmatpush.msra.mxu0 %v1100
    %1183 = vmatpush.msra.mxu0 %v1099
    %1184 = vmatmul.f32.gmra.mxu0 %v1166
    %v1185 = vpop.f32.mrf.mxu0
    %v1186 = vadd.f32 0.0, %v1185
    %1187 = vdwg.mxu0
    %v1189 = vrot.slane %v1186, 6
    %v1191 = vadd.f32 %v1097, %v1189
    %v1192 = vxor.u32 %v1191, 2147483648
    %v1193 = vmul.f32 %v1192, 1.442695
    %v1194 = vpow.pop %v1193
    %v1195 = vadd.f32 %v1194, 1.0
    %v1196 = vrcp.pop %v1195
    %v1197 = vmul.f32 %v1195, %v1196
    %v1198 = vsub.f32 1.0, %v1197
    %v1199 = vmul.f32 %v1196, %v1198
    %v1200 = vadd.f32 %v1196, %v1199
    %vm1201 = vweird.f32 %v1195
    %vm1202 = vweird.f32 %v1196
    %vm1203 = vmor %vm1201, %vm1202
    %v1204 = vsel %vm1203, %v1196, %v1200
    %v1205 = vand.u32 2147483647, %v1195
    %vm1206 = vcmp.eq.f32.partialorder %v1205, 8.507059e+37
    %v1207 = vand.u32 %v1195, 2147483648
    %v1208 = vor.u32 1.1754944e-38, %v1207
    %v1209 = vsel %vm1206, %v1208, %v1204
    %v1210 = vmul.f32 1.0, %v1209
    %v1211 = vtanh.pop %v1191
    %v1213 = vrot.slane %v1156, 6
    %v1215 = vmul.f32 %v1210, %v1213
    %1217 = vrot.lane.b32.xlu0 %v1211, 64
    %v1218 = vpop.permute.xlu0 %1217
    %v1220 = vmul.f32 %v1210, %v1218
    %1222 = vrot.lane.b32.xlu0 %v1220, 32
    %v1223 = vpop.permute.xlu0 %1222
    %v1225 = vadd.f32 %v1215, %v1223
    %v1226 = vtanh.pop %v1225
    %1228 = vrot.lane.b32.xlu0 %v1226, 64
    %v1229 = vpop.permute.xlu0 %1228
    %v1231 = vmul.f32 %v1210, %v1229
    %v1233 = vrot.slane %v1231, 2
    %1234 = vrot.lane.b32.xlu0 %v1233, 32
    %v1235 = vpop.permute.xlu0 %1234
    %v1236 = vsel %vm1034, %v1235, 0
    %1238 = vmatpush.msra.mxu0 0.0
    %1239 = vmatpush.msra.mxu0 0.0
    %1240 = vmatpush.msra.mxu0 0.0
    %1241 = vmatpush.msra.mxu0 0.0
    %1242 = vmatpush.msra.mxu0 0.0
    %1243 = vmatpush.msra.mxu0 0.0
    %1244 = vmatpush.msra.mxu0 0.0
    %1245 = vmatpush.msra.mxu0 0.0
    %1246 = vmatpush.msra.mxu0 0.0
    %1247 = vmatpush.msra.mxu0 0.0
    %1248 = vmatpush.msra.mxu0 0.0
    %1249 = vmatpush.msra.mxu0 0.0
    %1250 = vmatpush.msra.mxu0 %v1102
    %1251 = vmatpush.msra.mxu0 %v1101
    %1252 = vmatpush.msra.mxu0 %v1100
    %1253 = vmatpush.msra.mxu0 %v1099
    %1254 = vmatmul.f32.gmra.mxu0 %v1236
    %v1255 = vpop.f32.mrf.mxu0
    %v1256 = vadd.f32 0.0, %v1255
    %1257 = vdwg.mxu0
    %v1259 = vrot.slane %v1256, 4
    %v1261 = vadd.f32 %v1097, %v1259
    %v1262 = vxor.u32 %v1261, 2147483648
    %v1263 = vmul.f32 %v1262, 1.442695
    %v1264 = vpow.pop %v1263
    %v1265 = vadd.f32 %v1264, 1.0
    %v1266 = vrcp.pop %v1265
    %v1267 = vmul.f32 %v1265, %v1266
    %v1268 = vsub.f32 1.0, %v1267
    %v1269 = vmul.f32 %v1266, %v1268
    %v1270 = vadd.f32 %v1266, %v1269
    %vm1271 = vweird.f32 %v1265
    %vm1272 = vweird.f32 %v1266
    %vm1273 = vmor %vm1271, %vm1272
    %v1274 = vsel %vm1273, %v1266, %v1270
    %v1275 = vand.u32 2147483647, %v1265
    %vm1276 = vcmp.eq.f32.partialorder %v1275, 8.507059e+37
    %v1277 = vand.u32 %v1265, 2147483648
    %v1278 = vor.u32 1.1754944e-38, %v1277
    %v1279 = vsel %vm1276, %v1278, %v1274
    %v1280 = vmul.f32 1.0, %v1279
    %v1281 = vtanh.pop %v1261
    %v1283 = vrot.slane %v1225, 6
    %v1285 = vmul.f32 %v1280, %v1283
    %1287 = vrot.lane.b32.xlu0 %v1281, 64
    %v1288 = vpop.permute.xlu0 %1287
    %v1290 = vmul.f32 %v1280, %v1288
    %1292 = vrot.lane.b32.xlu0 %v1290, 32
    %v1293 = vpop.permute.xlu0 %1292
    %v1295 = vadd.f32 %v1285, %v1293
    %v1296 = vtanh.pop %v1295
    %1298 = vrot.lane.b32.xlu0 %v1296, 64
    %v1299 = vpop.permute.xlu0 %1298
    %v1301 = vmul.f32 %v1280, %v1299
    %v1303 = vrot.slane %v1301, 4
    %1304 = vrot.lane.b32.xlu0 %v1303, 32
    %v1305 = vpop.permute.xlu0 %1304
    %v1306 = vsel %vm1034, %v1305, 0
    %1308 = vmatpush.msra.mxu0 0.0
    %1309 = vmatpush.msra.mxu0 0.0
    %1310 = vmatpush.msra.mxu0 0.0
    %1311 = vmatpush.msra.mxu0 0.0
    %1312 = vmatpush.msra.mxu0 0.0
    %1313 = vmatpush.msra.mxu0 0.0
    %1314 = vmatpush.msra.mxu0 0.0
    %1315 = vmatpush.msra.mxu0 0.0
    %1316 = vmatpush.msra.mxu0 0.0
    %1317 = vmatpush.msra.mxu0 0.0
    %1318 = vmatpush.msra.mxu0 0.0
    %1319 = vmatpush.msra.mxu0 0.0
    %1320 = vmatpush.msra.mxu0 %v1102
    %1321 = vmatpush.msra.mxu0 %v1101
    %1322 = vmatpush.msra.mxu0 %v1100
    %1323 = vmatpush.msra.mxu0 %v1099
    %1324 = vmatmul.f32.gmra.mxu0 %v1306
    %v1325 = vpop.f32.mrf.mxu0
    %v1326 = vadd.f32 0.0, %v1325
    %1327 = vdwg.mxu0
    %v1329 = vrot.slane %v1326, 2
    %v1331 = vadd.f32 %v1097, %v1329
    %v1332 = vxor.u32 %v1331, 2147483648
    %v1333 = vmul.f32 %v1332, 1.442695
    %v1334 = vpow.pop %v1333
    %v1335 = vadd.f32 %v1334, 1.0
    %v1336 = vrcp.pop %v1335
    %v1337 = vmul.f32 %v1335, %v1336
    %v1338 = vsub.f32 1.0, %v1337
    %v1339 = vmul.f32 %v1336, %v1338
    %v1340 = vadd.f32 %v1336, %v1339
    %vm1341 = vweird.f32 %v1335
    %vm1342 = vweird.f32 %v1336
    %vm1343 = vmor %vm1341, %vm1342
    %v1344 = vsel %vm1343, %v1336, %v1340
    %v1345 = vand.u32 2147483647, %v1335
    %vm1346 = vcmp.eq.f32.partialorder %v1345, 8.507059e+37
    %v1347 = vand.u32 %v1335, 2147483648
    %v1348 = vor.u32 1.1754944e-38, %v1347
    %v1349 = vsel %vm1346, %v1348, %v1344
    %v1350 = vmul.f32 1.0, %v1349
    %v1351 = vtanh.pop %v1331
    %v1353 = vrot.slane %v1295, 6
    %v1355 = vmul.f32 %v1350, %v1353
    %1357 = vrot.lane.b32.xlu0 %v1351, 64
    %v1358 = vpop.permute.xlu0 %1357
    %v1360 = vmul.f32 %v1350, %v1358
    %1362 = vrot.lane.b32.xlu0 %v1360, 32
    %v1363 = vpop.permute.xlu0 %1362
    %v1365 = vadd.f32 %v1355, %v1363
    %v1366 = vtanh.pop %v1365
    %1368 = vrot.lane.b32.xlu0 %v1366, 64
    %v1369 = vpop.permute.xlu0 %1368
    %v1371 = vmul.f32 %v1350, %v1369
    %v1373 = vrot.slane %v1371, 6
    %1374 = vrot.lane.b32.xlu0 %v1373, 32
    %v1375 = vpop.permute.xlu0 %1374
    %v1376 = vsel %vm1034, %v1375, 0
    %1378 = vmatpush.msra.mxu0 0.0
    %1379 = vmatpush.msra.mxu0 0.0
    %1380 = vmatpush.msra.mxu0 0.0
    %1381 = vmatpush.msra.mxu0 0.0
    %1382 = vmatpush.msra.mxu0 0.0
    %1383 = vmatpush.msra.mxu0 0.0
    %1384 = vmatpush.msra.mxu0 0.0
    %1385 = vmatpush.msra.mxu0 0.0
    %1386 = vmatpush.msra.mxu0 0.0
    %1387 = vmatpush.msra.mxu0 0.0
    %1388 = vmatpush.msra.mxu0 0.0
    %1389 = vmatpush.msra.mxu0 0.0
    %1390 = vmatpush.msra.mxu0 %v1102
    %1391 = vmatpush.msra.mxu0 %v1101
    %1392 = vmatpush.msra.mxu0 %v1100
    %1393 = vmatpush.msra.mxu0 %v1099
    %1394 = vmatmul.f32.gmra.mxu0 %v1376
    %v1395 = vpop.f32.mrf.mxu0
    %v1396 = vadd.f32 0.0, %v1395
    %1397 = vdwg.mxu0
    %v1398 = vadd.f32 %v1098, %v1396
    %v1399 = vxor.u32 %v1398, 2147483648
    %v1400 = vmul.f32 %v1399, 1.442695
    %v1401 = vpow.pop %v1400
    %v1402 = vadd.f32 %v1401, 1.0
    %v1403 = vrcp.pop %v1402
    %v1404 = vmul.f32 %v1402, %v1403
    %v1405 = vsub.f32 1.0, %v1404
    %v1406 = vmul.f32 %v1403, %v1405
    %v1407 = vadd.f32 %v1403, %v1406
    %vm1408 = vweird.f32 %v1402
    %vm1409 = vweird.f32 %v1403
    %vm1410 = vmor %vm1408, %vm1409
    %v1411 = vsel %vm1410, %v1403, %v1407
    %v1412 = vand.u32 2147483647, %v1402
    %vm1413 = vcmp.eq.f32.partialorder %v1412, 8.507059e+37
    %v1414 = vand.u32 %v1402, 2147483648
    %v1415 = vor.u32 1.1754944e-38, %v1414
    %v1416 = vsel %vm1413, %v1415, %v1411
    %v1417 = vmul.f32 1.0, %v1416
    %v1418 = vtanh.pop %v1398
    %v1420 = vrot.slane %v1365, 6
    %v1422 = vmul.f32 %v1417, %v1420
    %1424 = vrot.lane.b32.xlu0 %v1418, 64
    %v1425 = vpop.permute.xlu0 %1424
    %v1427 = vmul.f32 %v1417, %v1425
    %1429 = vrot.lane.b32.xlu0 %v1427, 32
    %v1430 = vpop.permute.xlu0 %1429
    %v1432 = vadd.f32 %v1422, %v1430
    %v1433 = vtanh.pop %v1432
    %1435 = vrot.lane.b32.xlu0 %v1433, 64
    %v1436 = vpop.permute.xlu0 %1435
    %v1438 = vmul.f32 %v1417, %v1436
    %1440 = vrot.lane.b32.xlu0 %v1438, 32
    %v1441 = vpop.permute.xlu0 %1440
    %v1442 = vsel %vm1034, %v1441, 0
    %1444 = vmatpush.msra.mxu0 0.0
    %1445 = vmatpush.msra.mxu0 0.0
    %1446 = vmatpush.msra.mxu0 0.0
    %1447 = vmatpush.msra.mxu0 0.0
    %1448 = vmatpush.msra.mxu0 0.0
    %1449 = vmatpush.msra.mxu0 0.0
    %1450 = vmatpush.msra.mxu0 0.0
    %1451 = vmatpush.msra.mxu0 0.0
    %1452 = vmatpush.msra.mxu0 0.0
    %1453 = vmatpush.msra.mxu0 0.0
    %1454 = vmatpush.msra.mxu0 0.0
    %1455 = vmatpush.msra.mxu0 0.0
    %1456 = vmatpush.msra.mxu0 %v1102
    %1457 = vmatpush.msra.mxu0 %v1101
    %1458 = vmatpush.msra.mxu0 %v1100
    %1459 = vmatpush.msra.mxu0 %v1099
    %1460 = vmatmul.f32.gmra.mxu0 %v1442
    %v1461 = vpop.f32.mrf.mxu0
    %v1462 = vadd.f32 0.0, %v1461
    %1463 = vdwg.mxu0
    %v1465 = vrot.slane %v1462, 6
    %v1467 = vadd.f32 %v1098, %v1465
    %v1468 = vxor.u32 %v1467, 2147483648
    %v1469 = vmul.f32 %v1468, 1.442695
    %v1470 = vpow.pop %v1469
    %v1471 = vadd.f32 %v1470, 1.0
    %v1472 = vrcp.pop %v1471
    %v1473 = vmul.f32 %v1471, %v1472
    %v1474 = vsub.f32 1.0, %v1473
    %v1475 = vmul.f32 %v1472, %v1474
    %v1476 = vadd.f32 %v1472, %v1475
    %vm1477 = vweird.f32 %v1471
    %vm1478 = vweird.f32 %v1472
    %vm1479 = vmor %vm1477, %vm1478
    %v1480 = vsel %vm1479, %v1472, %v1476
    %v1481 = vand.u32 2147483647, %v1471
    %vm1482 = vcmp.eq.f32.partialorder %v1481, 8.507059e+37
    %v1483 = vand.u32 %v1471, 2147483648
    %v1484 = vor.u32 1.1754944e-38, %v1483
    %v1485 = vsel %vm1482, %v1484, %v1480
    %v1486 = vmul.f32 1.0, %v1485
    %v1487 = vtanh.pop %v1467
    %v1489 = vrot.slane %v1432, 6
    %v1491 = vmul.f32 %v1486, %v1489
    %1493 = vrot.lane.b32.xlu0 %v1487, 64
    %v1494 = vpop.permute.xlu0 %1493
    %v1496 = vmul.f32 %v1486, %v1494
    %1498 = vrot.lane.b32.xlu0 %v1496, 32
    %v1499 = vpop.permute.xlu0 %1498
    %v1501 = vadd.f32 %v1491, %v1499
    %v1502 = vtanh.pop %v1501
    %1504 = vrot.lane.b32.xlu0 %v1502, 64
    %v1505 = vpop.permute.xlu0 %1504
    %v1507 = vmul.f32 %v1486, %v1505
    %v1509 = vrot.slane %v1507, 2
    %1510 = vrot.lane.b32.xlu0 %v1509, 32
    %v1511 = vpop.permute.xlu0 %1510
    %v1512 = vsel %vm1034, %v1511, 0
    %1514 = vmatpush.msra.mxu0 0.0
    %1515 = vmatpush.msra.mxu0 0.0
    %1516 = vmatpush.msra.mxu0 0.0
    %1517 = vmatpush.msra.mxu0 0.0
    %1518 = vmatpush.msra.mxu0 0.0
    %1519 = vmatpush.msra.mxu0 0.0
    %1520 = vmatpush.msra.mxu0 0.0
    %1521 = vmatpush.msra.mxu0 0.0
    %1522 = vmatpush.msra.mxu0 0.0
    %1523 = vmatpush.msra.mxu0 0.0
    %1524 = vmatpush.msra.mxu0 0.0
    %1525 = vmatpush.msra.mxu0 0.0
    %1526 = vmatpush.msra.mxu0 %v1102
    %1527 = vmatpush.msra.mxu0 %v1101
    %1528 = vmatpush.msra.mxu0 %v1100
    %1529 = vmatpush.msra.mxu0 %v1099
    %1530 = vmatmul.f32.gmra.mxu0 %v1512
    %v1531 = vpop.f32.mrf.mxu0
    %v1532 = vadd.f32 0.0, %v1531
    %1533 = vdwg.mxu0
    %v1535 = vrot.slane %v1532, 4
    %v1537 = vadd.f32 %v1098, %v1535
    %v1538 = vxor.u32 %v1537, 2147483648
    %v1539 = vmul.f32 %v1538, 1.442695
    %v1540 = vpow.pop %v1539
    %v1541 = vadd.f32 %v1540, 1.0
    %v1542 = vrcp.pop %v1541
    %v1543 = vmul.f32 %v1541, %v1542
    %v1544 = vsub.f32 1.0, %v1543
    %v1545 = vmul.f32 %v1542, %v1544
    %v1546 = vadd.f32 %v1542, %v1545
    %vm1547 = vweird.f32 %v1541
    %vm1548 = vweird.f32 %v1542
    %vm1549 = vmor %vm1547, %vm1548
    %v1550 = vsel %vm1549, %v1542, %v1546
    %v1551 = vand.u32 2147483647, %v1541
    %vm1552 = vcmp.eq.f32.partialorder %v1551, 8.507059e+37
    %v1553 = vand.u32 %v1541, 2147483648
    %v1554 = vor.u32 1.1754944e-38, %v1553
    %v1555 = vsel %vm1552, %v1554, %v1550
    %v1556 = vmul.f32 1.0, %v1555
    %v1557 = vtanh.pop %v1537
    %v1559 = vrot.slane %v1501, 6
    %v1561 = vmul.f32 %v1556, %v1559
    %1563 = vrot.lane.b32.xlu0 %v1557, 64
    %v1564 = vpop.permute.xlu0 %1563
    %v1566 = vmul.f32 %v1556, %v1564
    %1568 = vrot.lane.b32.xlu0 %v1566, 32
    %v1569 = vpop.permute.xlu0 %1568
    %v1571 = vadd.f32 %v1561, %v1569
    %v1572 = vtanh.pop %v1571
    %1574 = vrot.lane.b32.xlu0 %v1572, 64
    %v1575 = vpop.permute.xlu0 %1574
    %v1577 = vmul.f32 %v1556, %v1575
    %v1579 = vrot.slane %v1577, 4
    %1580 = vrot.lane.b32.xlu0 %v1579, 32
    %v1581 = vpop.permute.xlu0 %1580
    %v1582 = vsel %vm1034, %v1581, 0
    %1584 = vmatpush.msra.mxu0 0.0
    %1585 = vmatpush.msra.mxu0 0.0
    %1586 = vmatpush.msra.mxu0 0.0
    %1587 = vmatpush.msra.mxu0 0.0
    %1588 = vmatpush.msra.mxu0 0.0
    %1589 = vmatpush.msra.mxu0 0.0
    %1590 = vmatpush.msra.mxu0 0.0
    %1591 = vmatpush.msra.mxu0 0.0
    %1592 = vmatpush.msra.mxu0 0.0
    %1593 = vmatpush.msra.mxu0 0.0
    %1594 = vmatpush.msra.mxu0 0.0
    %1595 = vmatpush.msra.mxu0 0.0
    %1596 = vmatpush.msra.mxu0 %v1102
    %1597 = vmatpush.msra.mxu0 %v1101
    %1598 = vmatpush.msra.mxu0 %v1100
    %1599 = vmatpush.msra.mxu0 %v1099
    %1600 = vmatmul.f32.gmra.mxu0 %v1582
    %v1601 = vpop.f32.mrf.mxu0
    %v1602 = vadd.f32 0.0, %v1601
    %1603 = vdwg.mxu0
    %v1605 = vrot.slane %v1602, 2
    %v1607 = vadd.f32 %v1098, %v1605
    %v1608 = vxor.u32 %v1607, 2147483648
    %v1609 = vmul.f32 %v1608, 1.442695
    %v1610 = vpow.pop %v1609
    %v1611 = vadd.f32 %v1610, 1.0
    %v1612 = vrcp.pop %v1611
    %v1613 = vmul.f32 %v1611, %v1612
    %v1614 = vsub.f32 1.0, %v1613
    %v1615 = vmul.f32 %v1612, %v1614
    %v1616 = vadd.f32 %v1612, %v1615
    %vm1617 = vweird.f32 %v1611
    %vm1618 = vweird.f32 %v1612
    %vm1619 = vmor %vm1617, %vm1618
    %v1620 = vsel %vm1619, %v1612, %v1616
    %v1621 = vand.u32 2147483647, %v1611
    %vm1622 = vcmp.eq.f32.partialorder %v1621, 8.507059e+37
    %v1623 = vand.u32 %v1611, 2147483648
    %v1624 = vor.u32 1.1754944e-38, %v1623
    %v1625 = vsel %vm1622, %v1624, %v1620
    %v1626 = vmul.f32 1.0, %v1625
    %v1627 = vtanh.pop %v1607
    %v1629 = vrot.slane %v1571, 6
    %v1631 = vmul.f32 %v1626, %v1629
    %1633 = vrot.lane.b32.xlu0 %v1627, 64
    %v1634 = vpop.permute.xlu0 %1633
    %v1636 = vmul.f32 %v1626, %v1634
    %1638 = vrot.lane.b32.xlu0 %v1636, 32
    %v1639 = vpop.permute.xlu0 %1638
    %v1641 = vadd.f32 %v1631, %v1639
    %v1642 = vtanh.pop %v1641
    %1644 = vrot.lane.b32.xlu0 %v1642, 64
    %v1645 = vpop.permute.xlu0 %1644
    %v1647 = vmul.f32 %v1626, %v1645
    %v1648 = vld [vmem:[%s8] sm:$0xff]
    %v1649 = vld [vmem:[%s8 + $0x8] sm:$0xff]
    %v1650 = vld [vmem:[%s8 + $0x10] sm:$0xff]
    %v1651 = vld [vmem:[%s8 + $0x18] sm:$0xff]
    %v1652 = vld [vmem:[%s9] sm:$0xff]
    %v1653 = vld [vmem:[%s9 + $0x8] sm:$0xff]
    %v1654 = vld [vmem:[%s9 + $0x10] sm:$0xff]
    %v1655 = vld [vmem:[%s9 + $0x18] sm:$0xff]
    %v1656 = vrot.slane %v1025, 6
    %v1657 = vsel %vm1034, %v1656, 0
    %1659 = vmatpush.msra.mxu0 0.0
    %1660 = vmatpush.msra.mxu0 0.0
    %1661 = vmatpush.msra.mxu0 0.0
    %1662 = vmatpush.msra.mxu0 0.0
    %1663 = vmatpush.msra.mxu0 0.0
    %1664 = vmatpush.msra.mxu0 0.0
    %1665 = vmatpush.msra.mxu0 0.0
    %1666 = vmatpush.msra.mxu0 0.0
    %1667 = vmatpush.msra.mxu0 0.0
    %1668 = vmatpush.msra.mxu0 0.0
    %1669 = vmatpush.msra.mxu0 0.0
    %1670 = vmatpush.msra.mxu0 0.0
    %1671 = vmatpush.msra.mxu0 %v1655
    %1672 = vmatpush.msra.mxu0 %v1654
    %1673 = vmatpush.msra.mxu0 %v1653
    %1674 = vmatpush.msra.mxu0 %v1652
    %1675 = vmatmul.f32.gmra.mxu0 %v1657
    %v1676 = vpop.f32.mrf.mxu0
    %v1677 = vadd.f32 0.0, %v1676
    %1678 = vdwg.mxu0
    %v1679 = vrot.slane %v1023, 6
    %v1680 = vsel %vm1034, %v1679, 0
    %1682 = vmatpush.msra.mxu0 0.0
    %1683 = vmatpush.msra.mxu0 0.0
    %1684 = vmatpush.msra.mxu0 0.0
    %1685 = vmatpush.msra.mxu0 0.0
    %1686 = vmatpush.msra.mxu0 0.0
    %1687 = vmatpush.msra.mxu0 0.0
    %1688 = vmatpush.msra.mxu0 0.0
    %1689 = vmatpush.msra.mxu0 0.0
    %1690 = vmatpush.msra.mxu0 0.0
    %1691 = vmatpush.msra.mxu0 0.0
    %1692 = vmatpush.msra.mxu0 0.0
    %1693 = vmatpush.msra.mxu0 0.0
    %1694 = vmatpush.msra.mxu0 %v1651
    %1695 = vmatpush.msra.mxu0 %v1650
    %1696 = vmatpush.msra.mxu0 %v1649
    %1697 = vmatpush.msra.mxu0 %v1648
    %1698 = vmatmul.f32.gmra.mxu0 %v1680
    %v1699 = vpop.f32.mrf.mxu0
    %v1700 = vadd.f32 %v1677, %v1699
    %1701 = vdwg.mxu0
    %v1702 = vld [vmem:[%s10] sm:$0x1]
    %v1704 = vperm.slane %v1702, 0
    %v1706 = vadd.f32 %v1700, %v1704
    %v1707 = vxor.u32 %v1706, 2147483648
    %v1708 = vmul.f32 %v1707, 1.442695
    %v1709 = vpow.pop %v1708
    %v1710 = vadd.f32 %v1709, 1.0
    %v1711 = vrcp.pop %v1710
    %v1712 = vmul.f32 %v1710, %v1711
    %v1713 = vsub.f32 1.0, %v1712
    %v1714 = vmul.f32 %v1711, %v1713
    %v1715 = vadd.f32 %v1711, %v1714
    %vm1716 = vweird.f32 %v1710
    %vm1717 = vweird.f32 %v1711
    %vm1718 = vmor %vm1716, %vm1717
    %v1719 = vsel %vm1718, %v1711, %v1715
    %v1720 = vand.u32 2147483647, %v1710
    %vm1721 = vcmp.eq.f32.partialorder %v1720, 8.507059e+37
    %v1722 = vand.u32 %v1710, 2147483648
    %v1723 = vor.u32 1.1754944e-38, %v1722
    %v1724 = vsel %vm1721, %v1723, %v1719
    %v1725 = vmul.f32 1.0, %v1724
    %v1726 = vtanh.pop %v1706
    %v1727 = vmul.f32 %v1725, 0.0
    %1729 = vrot.lane.b32.xlu0 %v1726, 64
    %v1730 = vpop.permute.xlu0 %1729
    %v1732 = vmul.f32 %v1725, %v1730
    %1734 = vrot.lane.b32.xlu0 %v1732, 32
    %v1735 = vpop.permute.xlu0 %1734
    %v1737 = vadd.f32 %v1727, %v1735
    %v1738 = vtanh.pop %v1737
    %1740 = vrot.lane.b32.xlu0 %v1738, 64
    %v1741 = vpop.permute.xlu0 %1740
    %v1743 = vmul.f32 %v1725, %v1741
    %1745 = vrot.lane.b32.xlu0 %v1647, 32
    %v1746 = vpop.permute.xlu0 %1745
    %v1749 = vrot.slane %v1743, 2
    %1750 = vrot.lane.b32.xlu0 %v1749, 64
    %v1751 = vpop.permute.xlu0 %1750
    %v1753 = vsel %vm1034, %v1746, %v1751
    %v1754 = vld [vmem:[%s11] sm:$0xff]
    %v1755 = vld [vmem:[%s11 + $0x8] sm:$0xff]
    %v1756 = vld [vmem:[%s11 + $0x10] sm:$0xff]
    %v1757 = vld [vmem:[%s11 + $0x18] sm:$0xff]
    %v1758 = vld [vmem:[%s11 + $0x20] sm:$0xff]
    %v1759 = vld [vmem:[%s11 + $0x28] sm:$0xff]
    %v1760 = vld [vmem:[%s11 + $0x30] sm:$0xff]
    %v1761 = vld [vmem:[%s11 + $0x38] sm:$0xff]
    %v1762 = vld [vmem:[%s12] sm:$0x1]
    %v1764 = vperm.slane %v1762, 0
    %v1767 = vrot.slane %v1753, 6
    %v1768 = vsel %vm136, %v1767, 0
    %1770 = vmatpush.msra.mxu0 0.0
    %1771 = vmatpush.msra.mxu0 0.0
    %1772 = vmatpush.msra.mxu0 0.0
    %1773 = vmatpush.msra.mxu0 0.0
    %1774 = vmatpush.msra.mxu0 0.0
    %1775 = vmatpush.msra.mxu0 0.0
    %1776 = vmatpush.msra.mxu0 0.0
    %1777 = vmatpush.msra.mxu0 0.0
    %1778 = vmatpush.msra.mxu0 %v1761
    %1779 = vmatpush.msra.mxu0 %v1760
    %1780 = vmatpush.msra.mxu0 %v1759
    %1781 = vmatpush.msra.mxu0 %v1758
    %1782 = vmatpush.msra.mxu0 %v1757
    %1783 = vmatpush.msra.mxu0 %v1756
    %1784 = vmatpush.msra.mxu0 %v1755
    %1785 = vmatpush.msra.mxu0 %v1754
    %1786 = vmatmul.f32.gmra.mxu0 %v1768
    %v1787 = vpop.f32.mrf.mxu0
    %v1788 = vadd.f32 %v1764, %v1787
    %1789 = vdwg.mxu0
    %vm1790 = vcmask 74752
    %1791 = vst.msk [vmem:[#allocation4] sm:$0x3] %vm1790, %v1788
    // Predicated region
    $region54: #{brnn_forward.1} parent=1 // pred_check
      _
    $region55: #{brnn_forward.1} parent=1 // pred_check_branch
      %1793 = sbr.rel (0) target = $region57
    $region56: #{brnn_forward.1} parent=1 // pred_region
      %1795 = vsyncadd [#allocation5], 0
      %s1797 = sshll.u32 [#allocation4], 4
      %s1798 = int_to_ptr.vmem [resolvable:$true] %s1797
      %s1799 = sshll.u32 %s13, 4
      %s1800 = int_to_ptr.hbm [resolvable:$true] %s1799
      %1802 = dma.vmem_to_hbm [thread:$0]  %s1798, 32, %s1800, [#allocation5]
    $region57: #{brnn_forward.1} parent=1 // pred_fallthru
      _
    // Predicated region
    $region58: #{brnn_forward.1} parent=1 // pred_check
      _
    $region59: #{brnn_forward.1} parent=1 // pred_check_branch
      %1804 = sbr.rel (0) target = $region61
    $region60: #{brnn_forward.1} parent=1 // pred_region
      %1806 = dma.done [#allocation5], 32
    $region61: #{brnn_forward.1} parent=1 // pred_fallthru
      _
    %1807 = vsyncpa [#allocation5], 1

</llo_original>
